<compile_context>
chip_gen: v5e
topology: v5e:2x2
jax: 0.10.0
libtpu: 0.0.40
codegen_flags: <defaults>
</compile_context>

<pallas_src>
import functools

import jax
import jax.numpy as jnp
from jax.experimental import pallas as pl
from jax.experimental.pallas import tpu as pltpu


# --------------------------- tiled projection matmul ------------------------

def _matmul_kernel(x_ref, w_ref, o_ref, acc_ref):
    @pl.when(pl.program_id(2) == 0)
    def _():
        acc_ref[...] = jnp.zeros_like(acc_ref)
    acc_ref[...] += jnp.dot(x_ref[...].astype(jnp.bfloat16),
                            w_ref[...].astype(jnp.bfloat16),
                            preferred_element_type=jnp.float32)
    @pl.when(pl.program_id(2) == pl.num_programs(2) - 1)
    def _():
        o_ref[...] = acc_ref[...].astype(o_ref.dtype)


def _fit(dim, target):
    # use `target` as the tile if it evenly divides `dim`, otherwise full dim
    return target if (target is not None and 0 < target <= dim
                      and dim % target == 0) else dim


def pallas_matmul(x, w, tm=256, tn=256, tk=512):
    m, k = x.shape
    k2, n = w.shape
    assert k == k2
    tm, tn, tk = _fit(m, tm), _fit(n, tn), _fit(k, tk)
    return pl.pallas_call(
        _matmul_kernel,
        out_shape=jax.ShapeDtypeStruct((m, n), jnp.float32),
        grid_spec=pltpu.PrefetchScalarGridSpec(
            num_scalar_prefetch=0,
            grid=(m // tm, n // tn, k // tk),
            in_specs=[pl.BlockSpec((tm, tk), lambda i, j, kk: (i, kk)),
                      pl.BlockSpec((tk, tn), lambda i, j, kk: (kk, j))],
            out_specs=pl.BlockSpec((tm, tn), lambda i, j, kk: (i, j)),
            scratch_shapes=[pltpu.VMEM((tm, tn), jnp.float32)]),
        compiler_params=pltpu.CompilerParams(
            dimension_semantics=("parallel", "parallel", "arbitrary")),
    )(x, w)


# ----------------- fused scores + rel_shift + softmax + P@V -----------------

def _fused_attn_kernel(q_ref, k_ref, v_ref, rk_ref, rwb_ref, rrb_ref,
                       o_ref, wbuf_ref, bdsh_ref, *, scale, h_blk):
    qlen, dh = q_ref.shape[2], q_ref.shape[3]
    rlen = rk_ref.shape[1]

    # Pass 1: BD = ((q + r_r_bias) * scale) @ r_k^T per head, staged into the
    # rel-shift window buffer (columns [0, rlen)).
    for hh in range(h_blk):
        qh = q_ref[0, hh]                                       # [qlen, dh] f32
        rrb = rrb_ref[hh:hh + 1, :]                              # [1, dh]
        q_bd = ((qh + rrb) * scale).astype(jnp.bfloat16)
        bd = jax.lax.dot_general(
            q_bd, rk_ref[hh].astype(jnp.bfloat16),
            (((1,), (1,)), ((), ())),
            preferred_element_type=jnp.float32)                  # [qlen, rlen]
        wbuf_ref[hh, :, 0:rlen] = bd

    # Build the doubled window  W[h, i, :] = [ BD[h, i, :], 0, BD[h, i+1, :] ]
    wbuf_ref[:, :, rlen:rlen + 1] = jnp.zeros((h_blk, qlen, 1), jnp.float32)
    wbuf_ref[:, qlen - 1:qlen, rlen + 1:2 * rlen + 1] = jnp.zeros(
        (h_blk, 1, rlen), jnp.float32)
    nxt = wbuf_ref[:, 1:qlen, 0:rlen]                            # rows 1..qlen-1
    wbuf_ref[:, 0:qlen - 1, rlen + 1:2 * rlen + 1] = nxt

    # Exact RelMultiHeadAttn._rel_shift:  shifted[i, j] = W[i, (rlen-1-i) + j]
    # (reproduces the concat+reshape semantics, including the wrapped entries).
    # TODO(synk): for long qlen replace this static per-row copy with a strided
    # pltpu.roll on the BD tile to avoid the unrolled loop.
    for i in range(qlen):
        s = rlen - 1 - i
        bdsh_ref[:, i:i + 1, :] = wbuf_ref[:, i:i + 1, s:s + rlen]

    # Pass 2: AC, softmax(AC + shifted BD), P @ V per head (scale pre-folded).
    for hh in range(h_blk):
        qh = q_ref[0, hh]
        rwb = rwb_ref[hh:hh + 1, :]
        q_ac = ((qh + rwb) * scale).astype(jnp.bfloat16)
        ac = jax.lax.dot_general(
            q_ac, k_ref[0, hh].astype(jnp.bfloat16),
            (((1,), (1,)), ((), ())),
            preferred_element_type=jnp.float32)                  # [qlen, klen]
        score = ac + bdsh_ref[hh]
        m = jnp.max(score, axis=-1, keepdims=True)
        e = jnp.exp(score - m)
        p = e * pl.reciprocal(jnp.sum(e, axis=-1, keepdims=True), approx=True)
        o_ref[0, hh] = jax.lax.dot_general(
            p.astype(jnp.bfloat16), v_ref[0, hh].astype(jnp.bfloat16),
            (((1,), (0,)), ((), ())),
            preferred_element_type=jnp.float32)
    # TODO(synk): attn_mask / mems / training-mode dropout paths not implemented.


def pallas_fused_attn(q, k, v, rk, r_w_bias, r_r_bias, scale, h_blk=None):
    bsz, n_head, qlen, dh = q.shape
    rlen = rk.shape[1]
    assert k.shape[2] == qlen and rlen == qlen, "mems=None path: klen==rlen==qlen"
    if h_blk is None:
        h_blk = 8 if n_head % 8 == 0 else n_head
    assert n_head % h_blk == 0

    kern = functools.partial(_fused_attn_kernel, scale=scale, h_blk=h_blk)
    return pl.pallas_call(
        kern,
        out_shape=jax.ShapeDtypeStruct((bsz, n_head, qlen, dh), jnp.float32),
        grid_spec=pltpu.PrefetchScalarGridSpec(
            num_scalar_prefetch=0,
            # head-block outer, batch inner -> rk / biases stay VMEM-resident
            grid=(n_head // h_blk, bsz),
            in_specs=[
                pl.BlockSpec((1, h_blk, qlen, dh), lambda h, b: (b, h, 0, 0)),
                pl.BlockSpec((1, h_blk, qlen, dh), lambda h, b: (b, h, 0, 0)),
                pl.BlockSpec((1, h_blk, qlen, dh), lambda h, b: (b, h, 0, 0)),
                pl.BlockSpec((h_blk, rlen, dh), lambda h, b: (h, 0, 0)),
                pl.BlockSpec((h_blk, dh), lambda h, b: (h, 0)),
                pl.BlockSpec((h_blk, dh), lambda h, b: (h, 0)),
            ],
            out_specs=pl.BlockSpec((1, h_blk, qlen, dh),
                                   lambda h, b: (b, h, 0, 0)),
            scratch_shapes=[
                pltpu.VMEM((h_blk, qlen, 2 * qlen + 1), jnp.float32),  # shift window
                pltpu.VMEM((h_blk, qlen, qlen), jnp.float32),          # shifted BD
            ]),
        compiler_params=pltpu.CompilerParams(
            dimension_semantics=("parallel", "arbitrary")),
    )(q, k, v, rk, r_w_bias, r_r_bias)


# ------------------- o_net + residual + LayerNorm (row-tiled) ---------------

def _out_ln_kernel(av_ref, w_ref, wo_ref, g_ref, b_ref, o_ref, *, eps):
    attn_out = jnp.dot(av_ref[...].astype(jnp.bfloat16),
                       wo_ref[...].astype(jnp.bfloat16),
                       preferred_element_type=jnp.float32)
    x = w_ref[...] + attn_out
    mu = jnp.mean(x, axis=-1, keepdims=True)
    var = jnp.mean(jnp.square(x - mu), axis=-1, keepdims=True)
    o_ref[...] = (x - mu) * jax.lax.rsqrt(var + eps) * g_ref[...] + b_ref[...]


def pallas_out_layernorm(attn_vec, w_flat, w_o, gamma, beta, eps=1e-5, tm=256):
    m, d_model = w_flat.shape
    d_inner = attn_vec.shape[1]
    tm = _fit(m, tm)
    kern = functools.partial(_out_ln_kernel, eps=eps)
    return pl.pallas_call(
        kern,
        out_shape=jax.ShapeDtypeStruct((m, d_model), jnp.float32),
        grid_spec=pltpu.PrefetchScalarGridSpec(
            num_scalar_prefetch=0,
            grid=(m // tm,),
            in_specs=[
                pl.BlockSpec((tm, d_inner), lambda i: (i, 0)),
                pl.BlockSpec((tm, d_model), lambda i: (i, 0)),
                pl.BlockSpec((d_inner, d_model), lambda i: (0, 0)),  # resident
                pl.BlockSpec((1, d_model), lambda i: (0, 0)),        # resident
                pl.BlockSpec((1, d_model), lambda i: (0, 0)),        # resident
            ],
            out_specs=pl.BlockSpec((tm, d_model), lambda i: (i, 0))),
        compiler_params=pltpu.CompilerParams(
            dimension_semantics=("parallel",)),
    )(attn_vec, w_flat, w_o, gamma, beta)


# ------------------------------ forward glue --------------------------------

def rel_attn_forward(w, r, params, n_head, d_head):
    qlen, bsz, d_model = w.shape
    rlen = r.shape[0]
    assert rlen == qlen, "mems=None path requires rlen == qlen"
    scale = 1.0 / d_head ** 0.5

    # qkv_net / r_net projections (tiled Pallas matmuls)
    w_heads = pallas_matmul(w.reshape(qlen * bsz, d_model), params['W_qkv'])
    w_heads = w_heads.reshape(qlen, bsz, 3, n_head, d_head)
    r_head_k = pallas_matmul(r, params['W_r'])                 # [rlen, n*dh]

    # head-major layout [bsz, n_head, seq, d_head] for the fused attention
    q = w_heads[:, :, 0].transpose(1, 2, 0, 3)
    k = w_heads[:, :, 1].transpose(1, 2, 0, 3)
    v = w_heads[:, :, 2].transpose(1, 2, 0, 3)
    rk = r_head_k.reshape(rlen, n_head, d_head).transpose(1, 0, 2)

    attn_vec = pallas_fused_attn(q, k, v, rk, params['r_w_bias'],
                                 params['r_r_bias'], scale)    # [b, n, q, dh]

    attn_vec = attn_vec.transpose(2, 0, 1, 3).reshape(qlen * bsz,
                                                      n_head * d_head)
    out = pallas_out_layernorm(attn_vec, w.reshape(qlen * bsz, d_model),
                               params['W_o'],
                               params['gamma'].reshape(1, d_model),
                               params['beta'].reshape(1, d_model))
    return out.reshape(qlen, bsz, d_model)


# ---------------------- pure-JAX reference (for check) ----------------------

def rel_shift(x):
    b, n, q, r = x.shape
    zero_pad = jnp.zeros((b, n, q, 1), x.dtype)
    x_padded = jnp.concatenate([zero_pad, x], axis=3)
    x_padded = x_padded.reshape(b, n, r + 1, q)
    return x_padded[:, :, 1:, :].reshape(b, n, q, r)


def reference_forward(w, r, params, n_head, d_head, eps=1e-5):
    HP = jax.lax.Precision.HIGHEST
    qlen, bsz, d_model = w.shape
    rlen = r.shape[0]
    scale = 1.0 / d_head ** 0.5
    w_heads = jnp.einsum('qbd,de->qbe', w, params['W_qkv'], precision=HP)
    r_head_k = jnp.einsum('rd,de->re', r, params['W_r'], precision=HP)
    w_head_q, w_head_k, w_head_v = jnp.split(w_heads, 3, axis=-1)
    klen = w_head_k.shape[0]
    w_head_q = w_head_q.reshape(qlen, bsz, n_head, d_head)
    w_head_k = w_head_k.reshape(klen, bsz, n_head, d_head)
    w_head_v = w_head_v.reshape(klen, bsz, n_head, d_head)
    r_head_k = r_head_k.reshape(rlen, n_head, d_head)
    AC = jnp.einsum('ibnd,jbnd->bnij', w_head_q + params['r_w_bias'],
                    w_head_k, precision=HP)
    BD = jnp.einsum('ibnd,jnd->bnij', w_head_q + params['r_r_bias'],
                    r_head_k, precision=HP)
    BD = rel_shift(BD)
    attn_score = (AC + BD) * scale
    attn_prob = jax.nn.softmax(attn_score, axis=3)
    attn_vec = jnp.einsum('bnij,jbnd->ibnd', attn_prob, w_head_v, precision=HP)
    attn_vec = attn_vec.reshape(qlen, bsz, n_head * d_head)
    attn_out = jnp.einsum('ibe,ed->ibd', attn_vec, params['W_o'], precision=HP)
    x = w + attn_out
    mu = x.mean(-1, keepdims=True)
    var = ((x - mu) ** 2).mean(-1, keepdims=True)
    return (x - mu) / jnp.sqrt(var + eps) * params['gamma'] + params['beta']


# ----------------------------------- main ------------------------------------

if __name__ == "__main__":
    n_head, d_model, d_head = 4, 32, 8
    qlen, bsz = 8, 2
    rlen = qlen

    key = jax.random.PRNGKey(0)
    ks = jax.random.split(key, 8)
    params = {
        'W_qkv': 0.05 * jax.random.normal(ks[0], (d_model, 3 * n_head * d_head),
                                          jnp.float32),
        'W_r': 0.05 * jax.random.normal(ks[1], (d_model, n_head * d_head),
                                        jnp.float32),
        'W_o': 0.05 * jax.random.normal(ks[2], (n_head * d_head, d_model),
                                        jnp.float32),
        'r_w_bias': 0.05 * jax.random.normal(ks[3], (n_head, d_head),
                                             jnp.float32),
        'r_r_bias': 0.05 * jax.random.normal(ks[4], (n_head, d_head),
                                             jnp.float32),
        'gamma': jnp.ones((d_model,), jnp.float32),
        'beta': jnp.zeros((d_model,), jnp.float32),
    }
    w = jax.random.normal(ks[5], (qlen, bsz, d_model), jnp.float32)
    r = jax.random.normal(ks[6], (rlen, d_model), jnp.float32)

    fwd = jax.jit(rel_attn_forward, static_argnums=(3, 4))
    out = fwd(w, r, params, n_head, d_head)
    out = jax.block_until_ready(out)

    ref = reference_forward(w, r, params, n_head, d_head)
    assert out.shape == (qlen, bsz, d_model)
    assert bool(jnp.all(jnp.isfinite(out)))
    max_err = float(jnp.max(jnp.abs(out - ref)))
    assert max_err < 1e-2, f"mismatch vs reference: {max_err}"
    print("KERNEL_OK")
</pallas_src>

<mosaic_0001>
module attributes {stable_mosaic.version = 11 : i64} {
  func.func @_matmul_kernel(%arg0: i32, %arg1: i32, %arg2: i32, %arg3: memref<16x32xf32, #tpu.memory_space<vmem>>, %arg4: memref<32x96xf32, #tpu.memory_space<vmem>>, %arg5: memref<16x96xf32, #tpu.memory_space<vmem>>, %arg6: memref<16x96xf32, #tpu.memory_space<vmem>>) attributes {dimension_semantics = [#tpu.dimension_semantics<parallel>, #tpu.dimension_semantics<parallel>, #tpu.dimension_semantics<arbitrary>], iteration_bounds = array<i64: 1, 1, 1>, scalar_prefetch = 0 : i64, scratch_operands = 1 : i64, tpu.core_type = #tpu.core_type<tc>, window_params = [{transform_indices = @transform_0, window_bounds = array<i64: 16, 32>}, {transform_indices = @transform_1, window_bounds = array<i64: 32, 96>}, {transform_indices = @transform_2, window_bounds = array<i64: 16, 96>}]} {
    %c0_i32 = arith.constant 0 : i32
    %0 = arith.cmpi eq, %arg2, %c0_i32 : i32
    %1 = arith.extui %0 : i1 to i32
    %c0_i32_0 = arith.constant 0 : i32
    %2 = arith.cmpi ne, %1, %c0_i32_0 : i32
    scf.if %2 {
      %cst_10 = arith.constant 0.000000e+00 : f32
      %14 = vector.broadcast %cst_10 : f32 to vector<16x96xf32>
      %c0_11 = arith.constant 0 : index
      %c0_12 = arith.constant 0 : index
      %15 = vector.load %arg6[%c0_11, %c0_12] : memref<16x96xf32, #tpu.memory_space<vmem>>, vector<16x96xf32>
      tpu.vector_store %arg6[%c0_11, %c0_12], %14 {strides = array<i32>} : memref<16x96xf32, #tpu.memory_space<vmem>>, vector<16x96xf32>,
    } else {
    }
    %c0 = arith.constant 0 : index
    %c0_1 = arith.constant 0 : index
    %3 = vector.load %arg6[%c0, %c0_1] : memref<16x96xf32, #tpu.memory_space<vmem>>, vector<16x96xf32>
    %c0_2 = arith.constant 0 : index
    %c0_3 = arith.constant 0 : index
    %4 = vector.load %arg3[%c0_2, %c0_3] : memref<16x32xf32, #tpu.memory_space<vmem>>, vector<16x32xf32>
    %5 = arith.truncf %4 : vector<16x32xf32> to vector<16x32xbf16>
    %c0_4 = arith.constant 0 : index
    %c0_5 = arith.constant 0 : index
    %6 = vector.load %arg4[%c0_4, %c0_5] : memref<32x96xf32, #tpu.memory_space<vmem>>, vector<32x96xf32>
    %7 = arith.truncf %6 : vector<32x96xf32> to vector<32x96xbf16>
    %cst = arith.constant dense<0.000000e+00> : vector<16x96xf32>
    %8 = tpu.matmul %5, %7, %cst {dimension_numbers = #tpu.dot_dimension_numbers<[1], [0], [0], [1], [0, 0, 1, 1], [], []>} : vector<16x32xbf16>, vector<32x96xbf16>, vector<16x96xf32> -> vector<16x96xf32>
    %9 = arith.addf %3, %8 : vector<16x96xf32>
    %c0_6 = arith.constant 0 : index
    %c0_7 = arith.constant 0 : index
    %10 = vector.load %arg6[%c0_6, %c0_7] : memref<16x96xf32, #tpu.memory_space<vmem>>, vector<16x96xf32>
    tpu.vector_store %arg6[%c0_6, %c0_7], %9 {strides = array<i32>} : memref<16x96xf32, #tpu.memory_space<vmem>>, vector<16x96xf32>,
    %c0_i32_8 = arith.constant 0 : i32
    %11 = arith.cmpi eq, %arg2, %c0_i32_8 : i32
    %12 = arith.extui %11 : i1 to i32
    %c0_i32_9 = arith.constant 0 : i32
    %13 = arith.cmpi ne, %12, %c0_i32_9 : i32
    scf.if %13 {
      %c0_10 = arith.constant 0 : index
      %c0_11 = arith.constant 0 : index
      %14 = vector.load %arg6[%c0_10, %c0_11] : memref<16x96xf32, #tpu.memory_space<vmem>>, vector<16x96xf32>
      %c0_12 = arith.constant 0 : index
      %c0_13 = arith.constant 0 : index
      %15 = vector.load %arg5[%c0_12, %c0_13] : memref<16x96xf32, #tpu.memory_space<vmem>>, vector<16x96xf32>
      tpu.vector_store %arg5[%c0_12, %c0_13], %14 {strides = array<i32>} : memref<16x96xf32, #tpu.memory_space<vmem>>, vector<16x96xf32>,
    } else {
    }
    return
  }
  func.func @transform_0(%arg0: i32, %arg1: i32, %arg2: i32) -> (i32, i32) {
    %c0_i32 = arith.constant 0 : i32
    return %arg0, %arg2 : i32, i32
  }
  func.func @transform_1(%arg0: i32, %arg1: i32, %arg2: i32) -> (i32, i32) {
    %c0_i32 = arith.constant 0 : i32
    return %arg2, %arg1 : i32, i32
  }
  func.func @transform_2(%arg0: i32, %arg1: i32, %arg2: i32) -> (i32, i32) {
    %c0_i32 = arith.constant 0 : i32
    return %arg0, %arg1 : i32, i32
  }
}

module attributes {stable_mosaic.version = 11 : i64} {
  func.func @_matmul_kernel(%arg0: i32, %arg1: i32, %arg2: i32, %arg3: memref<8x32xf32, #tpu.memory_space<vmem>>, %arg4: memref<32x32xf32, #tpu.memory_space<vmem>>, %arg5: memref<8x32xf32, #tpu.memory_space<vmem>>, %arg6: memref<8x32xf32, #tpu.memory_space<vmem>>) attributes {dimension_semantics = [#tpu.dimension_semantics<parallel>, #tpu.dimension_semantics<parallel>, #tpu.dimension_semantics<arbitrary>], iteration_bounds = array<i64: 1, 1, 1>, scalar_prefetch = 0 : i64, scratch_operands = 1 : i64, tpu.core_type = #tpu.core_type<tc>, window_params = [{transform_indices = @transform_0, window_bounds = array<i64: 8, 32>}, {transform_indices = @transform_1, window_bounds = array<i64: 32, 32>}, {transform_indices = @transform_2, window_bounds = array<i64: 8, 32>}]} {
    %c0_i32 = arith.constant 0 : i32
    %0 = arith.cmpi eq, %arg2, %c0_i32 : i32
    %1 = arith.extui %0 : i1 to i32
    %c0_i32_0 = arith.constant 0 : i32
    %2 = arith.cmpi ne, %1, %c0_i32_0 : i32
    scf.if %2 {
      %cst_10 = arith.constant 0.000000e+00 : f32
      %14 = vector.broadcast %cst_10 : f32 to vector<8x32xf32>
      %c0_11 = arith.constant 0 : index
      %c0_12 = arith.constant 0 : index
      %15 = vector.load %arg6[%c0_11, %c0_12] : memref<8x32xf32, #tpu.memory_space<vmem>>, vector<8x32xf32>
      tpu.vector_store %arg6[%c0_11, %c0_12], %14 {strides = array<i32>} : memref<8x32xf32, #tpu.memory_space<vmem>>, vector<8x32xf32>,
    } else {
    }
    %c0 = arith.constant 0 : index
    %c0_1 = arith.constant 0 : index
    %3 = vector.load %arg6[%c0, %c0_1] : memref<8x32xf32, #tpu.memory_space<vmem>>, vector<8x32xf32>
    %c0_2 = arith.constant 0 : index
    %c0_3 = arith.constant 0 : index
    %4 = vector.load %arg3[%c0_2, %c0_3] : memref<8x32xf32, #tpu.memory_space<vmem>>, vector<8x32xf32>
    %5 = arith.truncf %4 : vector<8x32xf32> to vector<8x32xbf16>
    %c0_4 = arith.constant 0 : index
    %c0_5 = arith.constant 0 : index
    %6 = vector.load %arg4[%c0_4, %c0_5] : memref<32x32xf32, #tpu.memory_space<vmem>>, vector<32x32xf32>
    %7 = arith.truncf %6 : vector<32x32xf32> to vector<32x32xbf16>
    %cst = arith.constant dense<0.000000e+00> : vector<8x32xf32>
    %8 = tpu.matmul %5, %7, %cst {dimension_numbers = #tpu.dot_dimension_numbers<[1], [0], [0], [1], [0, 0, 1, 1], [], []>} : vector<8x32xbf16>, vector<32x32xbf16>, vector<8x32xf32> -> vector<8x32xf32>
    %9 = arith.addf %3, %8 : vector<8x32xf32>
    %c0_6 = arith.constant 0 : index
    %c0_7 = arith.constant 0 : index
    %10 = vector.load %arg6[%c0_6, %c0_7] : memref<8x32xf32, #tpu.memory_space<vmem>>, vector<8x32xf32>
    tpu.vector_store %arg6[%c0_6, %c0_7], %9 {strides = array<i32>} : memref<8x32xf32, #tpu.memory_space<vmem>>, vector<8x32xf32>,
    %c0_i32_8 = arith.constant 0 : i32
    %11 = arith.cmpi eq, %arg2, %c0_i32_8 : i32
    %12 = arith.extui %11 : i1 to i32
    %c0_i32_9 = arith.constant 0 : i32
    %13 = arith.cmpi ne, %12, %c0_i32_9 : i32
    scf.if %13 {
      %c0_10 = arith.constant 0 : index
      %c0_11 = arith.constant 0 : index
      %14 = vector.load %arg6[%c0_10, %c0_11] : memref<8x32xf32, #tpu.memory_space<vmem>>, vector<8x32xf32>
      %c0_12 = arith.constant 0 : index
      %c0_13 = arith.constant 0 : index
      %15 = vector.load %arg5[%c0_12, %c0_13] : memref<8x32xf32, #tpu.memory_space<vmem>>, vector<8x32xf32>
      tpu.vector_store %arg5[%c0_12, %c0_13], %14 {strides = array<i32>} : memref<8x32xf32, #tpu.memory_space<vmem>>, vector<8x32xf32>,
    } else {
    }
    return
  }
  func.func @transform_0(%arg0: i32, %arg1: i32, %arg2: i32) -> (i32, i32) {
    %c0_i32 = arith.constant 0 : i32
    return %arg0, %arg2 : i32, i32
  }
  func.func @transform_1(%arg0: i32, %arg1: i32, %arg2: i32) -> (i32, i32) {
    %c0_i32 = arith.constant 0 : i32
    return %arg2, %arg1 : i32, i32
  }
  func.func @transform_2(%arg0: i32, %arg1: i32, %arg2: i32) -> (i32, i32) {
    %c0_i32 = arith.constant 0 : i32
    return %arg0, %arg1 : i32, i32
  }
}

module attributes {stable_mosaic.version = 11 : i64} {
  func.func @_fused_attn_kernel(%arg0: i32, %arg1: i32, %arg2: memref<1x4x8x8xf32, #tpu.memory_space<vmem>>, %arg3: memref<1x4x8x8xf32, #tpu.memory_space<vmem>>, %arg4: memref<1x4x8x8xf32, #tpu.memory_space<vmem>>, %arg5: memref<4x8x8xf32, #tpu.memory_space<vmem>>, %arg6: memref<4x8xf32, #tpu.memory_space<vmem>>, %arg7: memref<4x8xf32, #tpu.memory_space<vmem>>, %arg8: memref<1x4x8x8xf32, #tpu.memory_space<vmem>>, %arg9: memref<4x8x17xf32, #tpu.memory_space<vmem>>, %arg10: memref<4x8x8xf32, #tpu.memory_space<vmem>>) attributes {dimension_semantics = [#tpu.dimension_semantics<parallel>, #tpu.dimension_semantics<arbitrary>], iteration_bounds = array<i64: 1, 2>, scalar_prefetch = 0 : i64, scratch_operands = 2 : i64, tpu.core_type = #tpu.core_type<tc>, window_params = [{transform_indices = @transform_0, window_bounds = array<i64: 1, 4, 8, 8>}, {transform_indices = @transform_1, window_bounds = array<i64: 1, 4, 8, 8>}, {transform_indices = @transform_2, window_bounds = array<i64: 1, 4, 8, 8>}, {transform_indices = @transform_3, window_bounds = array<i64: 4, 8, 8>}, {transform_indices = @transform_4, window_bounds = array<i64: 4, 8>}, {transform_indices = @transform_5, window_bounds = array<i64: 4, 8>}, {transform_indices = @transform_6, window_bounds = array<i64: 1, 4, 8, 8>}]} {
    %c0 = arith.constant 0 : index
    %c0_0 = arith.constant 0 : index
    %c0_1 = arith.constant 0 : index
    %c0_2 = arith.constant 0 : index
    %0 = vector.load %arg2[%c0, %c0_0, %c0_1, %c0_2] : memref<1x4x8x8xf32, #tpu.memory_space<vmem>>, vector<1x1x8x8xf32>
    %1 = vector.shape_cast %0 : vector<1x1x8x8xf32> to vector<8x8xf32>
    %c0_3 = arith.constant 0 : index
    %c0_4 = arith.constant 0 : index
    %2 = vector.load %arg7[%c0_3, %c0_4] : memref<4x8xf32, #tpu.memory_space<vmem>>, vector<1x8xf32>
    %3 = vector.broadcast %2 : vector<1x8xf32> to vector<8x8xf32>
    %4 = arith.addf %1, %3 : vector<8x8xf32>
    %cst = arith.constant 0.353553385 : f32
    %5 = vector.broadcast %cst : f32 to vector<8x8xf32>
    %6 = arith.mulf %4, %5 : vector<8x8xf32>
    %7 = arith.truncf %6 : vector<8x8xf32> to vector<8x8xbf16>
    %c0_5 = arith.constant 0 : index
    %c0_6 = arith.constant 0 : index
    %c0_7 = arith.constant 0 : index
    %8 = vector.load %arg5[%c0_5, %c0_6, %c0_7] : memref<4x8x8xf32, #tpu.memory_space<vmem>>, vector<1x8x8xf32>
    %9 = vector.shape_cast %8 : vector<1x8x8xf32> to vector<8x8xf32>
    %10 = arith.truncf %9 : vector<8x8xf32> to vector<8x8xbf16>
    %cst_8 = arith.constant dense<0.000000e+00> : vector<8x8xf32>
    %11 = tpu.matmul %7, %10, %cst_8 {dimension_numbers = #tpu.dot_dimension_numbers<[1], [1], [0], [0], [0, 0, 1, 0], [], []>} : vector<8x8xbf16>, vector<8x8xbf16>, vector<8x8xf32> -> vector<8x8xf32>
    %c0_9 = arith.constant 0 : index
    %c0_10 = arith.constant 0 : index
    %c0_11 = arith.constant 0 : index
    %12 = vector.load %arg9[%c0_9, %c0_10, %c0_11] : memref<4x8x17xf32, #tpu.memory_space<vmem>>, vector<1x8x8xf32>
    %13 = vector.shape_cast %12 : vector<1x8x8xf32> to vector<8x8xf32>
    %14 = vector.shape_cast %11 : vector<8x8xf32> to vector<1x8x8xf32>
    tpu.vector_store %arg9[%c0_9, %c0_10, %c0_11], %14 {strides = array<i32>} : memref<4x8x17xf32, #tpu.memory_space<vmem>>, vector<1x8x8xf32>,
    %c0_12 = arith.constant 0 : index
    %c1 = arith.constant 1 : index
    %c0_13 = arith.constant 0 : index
    %c0_14 = arith.constant 0 : index
    %15 = vector.load %arg2[%c0_12, %c1, %c0_13, %c0_14] : memref<1x4x8x8xf32, #tpu.memory_space<vmem>>, vector<1x1x8x8xf32>
    %16 = vector.shape_cast %15 : vector<1x1x8x8xf32> to vector<8x8xf32>
    %c1_15 = arith.constant 1 : index
    %c0_16 = arith.constant 0 : index
    %17 = vector.load %arg7[%c1_15, %c0_16] : memref<4x8xf32, #tpu.memory_space<vmem>>, vector<1x8xf32>
    %18 = vector.broadcast %17 : vector<1x8xf32> to vector<8x8xf32>
    %19 = arith.addf %16, %18 : vector<8x8xf32>
    %cst_17 = arith.constant 0.353553385 : f32
    %20 = vector.broadcast %cst_17 : f32 to vector<8x8xf32>
    %21 = arith.mulf %19, %20 : vector<8x8xf32>
    %22 = arith.truncf %21 : vector<8x8xf32> to vector<8x8xbf16>
    %c1_18 = arith.constant 1 : index
    %c0_19 = arith.constant 0 : index
    %c0_20 = arith.constant 0 : index
    %23 = vector.load %arg5[%c1_18, %c0_19, %c0_20] : memref<4x8x8xf32, #tpu.memory_space<vmem>>, vector<1x8x8xf32>
    %24 = vector.shape_cast %23 : vector<1x8x8xf32> to vector<8x8xf32>
    %25 = arith.truncf %24 : vector<8x8xf32> to vector<8x8xbf16>
    %cst_21 = arith.constant dense<0.000000e+00> : vector<8x8xf32>
    %26 = tpu.matmul %22, %25, %cst_21 {dimension_numbers = #tpu.dot_dimension_numbers<[1], [1], [0], [0], [0, 0, 1, 0], [], []>} : vector<8x8xbf16>, vector<8x8xbf16>, vector<8x8xf32> -> vector<8x8xf32>
    %c1_22 = arith.constant 1 : index
    %c0_23 = arith.constant 0 : index
    %c0_24 = arith.constant 0 : index
    %27 = vector.load %arg9[%c1_22, %c0_23, %c0_24] : memref<4x8x17xf32, #tpu.memory_space<vmem>>, vector<1x8x8xf32>
    %28 = vector.shape_cast %27 : vector<1x8x8xf32> to vector<8x8xf32>
    %29 = vector.shape_cast %26 : vector<8x8xf32> to vector<1x8x8xf32>
    tpu.vector_store %arg9[%c1_22, %c0_23, %c0_24], %29 {strides = array<i32>} : memref<4x8x17xf32, #tpu.memory_space<vmem>>, vector<1x8x8xf32>,
    %c0_25 = arith.constant 0 : index
    %c2 = arith.constant 2 : index
    %c0_26 = arith.constant 0 : index
    %c0_27 = arith.constant 0 : index
    %30 = vector.load %arg2[%c0_25, %c2, %c0_26, %c0_27] : memref<1x4x8x8xf32, #tpu.memory_space<vmem>>, vector<1x1x8x8xf32>
    %31 = vector.shape_cast %30 : vector<1x1x8x8xf32> to vector<8x8xf32>
    %c2_28 = arith.constant 2 : index
    %c0_29 = arith.constant 0 : index
    %32 = vector.load %arg7[%c2_28, %c0_29] : memref<4x8xf32, #tpu.memory_space<vmem>>, vector<1x8xf32>
    %33 = vector.broadcast %32 : vector<1x8xf32> to vector<8x8xf32>
    %34 = arith.addf %31, %33 : vector<8x8xf32>
    %cst_30 = arith.constant 0.353553385 : f32
    %35 = vector.broadcast %cst_30 : f32 to vector<8x8xf32>
    %36 = arith.mulf %34, %35 : vector<8x8xf32>
    %37 = arith.truncf %36 : vector<8x8xf32> to vector<8x8xbf16>
    %c2_31 = arith.constant 2 : index
    %c0_32 = arith.constant 0 : index
    %c0_33 = arith.constant 0 : index
    %38 = vector.load %arg5[%c2_31, %c0_32, %c0_33] : memref<4x8x8xf32, #tpu.memory_space<vmem>>, vector<1x8x8xf32>
    %39 = vector.shape_cast %38 : vector<1x8x8xf32> to vector<8x8xf32>
    %40 = arith.truncf %39 : vector<8x8xf32> to vector<8x8xbf16>
    %cst_34 = arith.constant dense<0.000000e+00> : vector<8x8xf32>
    %41 = tpu.matmul %37, %40, %cst_34 {dimension_numbers = #tpu.dot_dimension_numbers<[1], [1], [0], [0], [0, 0, 1, 0], [], []>} : vector<8x8xbf16>, vector<8x8xbf16>, vector<8x8xf32> -> vector<8x8xf32>
    %c2_35 = arith.constant 2 : index
    %c0_36 = arith.constant 0 : index
    %c0_37 = arith.constant 0 : index
    %42 = vector.load %arg9[%c2_35, %c0_36, %c0_37] : memref<4x8x17xf32, #tpu.memory_space<vmem>>, vector<1x8x8xf32>
    %43 = vector.shape_cast %42 : vector<1x8x8xf32> to vector<8x8xf32>
    %44 = vector.shape_cast %41 : vector<8x8xf32> to vector<1x8x8xf32>
    tpu.vector_store %arg9[%c2_35, %c0_36, %c0_37], %44 {strides = array<i32>} : memref<4x8x17xf32, #tpu.memory_space<vmem>>, vector<1x8x8xf32>,
    %c0_38 = arith.constant 0 : index
    %c3 = arith.constant 3 : index
    %c0_39 = arith.constant 0 : index
    %c0_40 = arith.constant 0 : index
    %45 = vector.load %arg2[%c0_38, %c3, %c0_39, %c0_40] : memref<1x4x8x8xf32, #tpu.memory_space<vmem>>, vector<1x1x8x8xf32>
    %46 = vector.shape_cast %45 : vector<1x1x8x8xf32> to vector<8x8xf32>
    %c3_41 = arith.constant 3 : index
    %c0_42 = arith.constant 0 : index
    %47 = vector.load %arg7[%c3_41, %c0_42] : memref<4x8xf32, #tpu.memory_space<vmem>>, vector<1x8xf32>
    %48 = vector.broadcast %47 : vector<1x8xf32> to vector<8x8xf32>
    %49 = arith.addf %46, %48 : vector<8x8xf32>
    %cst_43 = arith.constant 0.353553385 : f32
    %50 = vector.broadcast %cst_43 : f32 to vector<8x8xf32>
    %51 = arith.mulf %49, %50 : vector<8x8xf32>
    %52 = arith.truncf %51 : vector<8x8xf32> to vector<8x8xbf16>
    %c3_44 = arith.constant 3 : index
    %c0_45 = arith.constant 0 : index
    %c0_46 = arith.constant 0 : index
    %53 = vector.load %arg5[%c3_44, %c0_45, %c0_46] : memref<4x8x8xf32, #tpu.memory_space<vmem>>, vector<1x8x8xf32>
    %54 = vector.shape_cast %53 : vector<1x8x8xf32> to vector<8x8xf32>
    %55 = arith.truncf %54 : vector<8x8xf32> to vector<8x8xbf16>
    %cst_47 = arith.constant dense<0.000000e+00> : vector<8x8xf32>
    %56 = tpu.matmul %52, %55, %cst_47 {dimension_numbers = #tpu.dot_dimension_numbers<[1], [1], [0], [0], [0, 0, 1, 0], [], []>} : vector<8x8xbf16>, vector<8x8xbf16>, vector<8x8xf32> -> vector<8x8xf32>
    %c3_48 = arith.constant 3 : index
    %c0_49 = arith.constant 0 : index
    %c0_50 = arith.constant 0 : index
    %57 = vector.load %arg9[%c3_48, %c0_49, %c0_50] : memref<4x8x17xf32, #tpu.memory_space<vmem>>, vector<1x8x8xf32>
    %58 = vector.shape_cast %57 : vector<1x8x8xf32> to vector<8x8xf32>
    %59 = vector.shape_cast %56 : vector<8x8xf32> to vector<1x8x8xf32>
    tpu.vector_store %arg9[%c3_48, %c0_49, %c0_50], %59 {strides = array<i32>} : memref<4x8x17xf32, #tpu.memory_space<vmem>>, vector<1x8x8xf32>,
    %cst_51 = arith.constant 0.000000e+00 : f32
    %60 = vector.broadcast %cst_51 : f32 to vector<4x8x1xf32>
    %c0_52 = arith.constant 0 : index
    %c0_53 = arith.constant 0 : index
    %c8 = arith.constant 8 : index
    %61 = vector.load %arg9[%c0_52, %c0_53, %c8] : memref<4x8x17xf32, #tpu.memory_space<vmem>>, vector<4x8x1xf32>
    tpu.vector_store %arg9[%c0_52, %c0_53, %c8], %60 {strides = array<i32>} : memref<4x8x17xf32, #tpu.memory_space<vmem>>, vector<4x8x1xf32>,
    %cst_54 = arith.constant 0.000000e+00 : f32
    %62 = vector.broadcast %cst_54 : f32 to vector<4x1x8xf32>
    %c0_55 = arith.constant 0 : index
    %c7 = arith.constant 7 : index
    %c9 = arith.constant 9 : index
    %63 = vector.load %arg9[%c0_55, %c7, %c9] : memref<4x8x17xf32, #tpu.memory_space<vmem>>, vector<4x1x8xf32>
    tpu.vector_store %arg9[%c0_55, %c7, %c9], %62 {strides = array<i32>} : memref<4x8x17xf32, #tpu.memory_space<vmem>>, vector<4x1x8xf32>,
    %c0_56 = arith.constant 0 : index
    %c1_57 = arith.constant 1 : index
    %c0_58 = arith.constant 0 : index
    %64 = vector.load %arg9[%c0_56, %c1_57, %c0_58] : memref<4x8x17xf32, #tpu.memory_space<vmem>>, vector<4x7x8xf32>
    %c0_59 = arith.constant 0 : index
    %c0_60 = arith.constant 0 : index
    %c9_61 = arith.constant 9 : index
    %65 = vector.load %arg9[%c0_59, %c0_60, %c9_61] : memref<4x8x17xf32, #tpu.memory_space<vmem>>, vector<4x7x8xf32>
    tpu.vector_store %arg9[%c0_59, %c0_60, %c9_61], %64 {strides = array<i32>} : memref<4x8x17xf32, #tpu.memory_space<vmem>>, vector<4x7x8xf32>,
    %c0_62 = arith.constant 0 : index
    %c0_63 = arith.constant 0 : index
    %c7_64 = arith.constant 7 : index
    %66 = vector.load %arg9[%c0_62, %c0_63, %c7_64] : memref<4x8x17xf32, #tpu.memory_space<vmem>>, vector<4x1x8xf32>
    %c0_65 = arith.constant 0 : index
    %c0_66 = arith.constant 0 : index
    %c0_67 = arith.constant 0 : index
    %67 = vector.load %arg10[%c0_65, %c0_66, %c0_67] : memref<4x8x8xf32, #tpu.memory_space<vmem>>, vector<4x1x8xf32>
    tpu.vector_store %arg10[%c0_65, %c0_66, %c0_67], %66 {strides = array<i32>} : memref<4x8x8xf32, #tpu.memory_space<vmem>>, vector<4x1x8xf32>,
    %c0_68 = arith.constant 0 : index
    %c1_69 = arith.constant 1 : index
    %c6 = arith.constant 6 : index
    %68 = vector.load %arg9[%c0_68, %c1_69, %c6] : memref<4x8x17xf32, #tpu.memory_space<vmem>>, vector<4x1x8xf32>
    %c0_70 = arith.constant 0 : index
    %c1_71 = arith.constant 1 : index
    %c0_72 = arith.constant 0 : index
    %69 = vector.load %arg10[%c0_70, %c1_71, %c0_72] : memref<4x8x8xf32, #tpu.memory_space<vmem>>, vector<4x1x8xf32>
    tpu.vector_store %arg10[%c0_70, %c1_71, %c0_72], %68 {strides = array<i32>} : memref<4x8x8xf32, #tpu.memory_space<vmem>>, vector<4x1x8xf32>,
    %c0_73 = arith.constant 0 : index
    %c2_74 = arith.constant 2 : index
    %c5 = arith.constant 5 : index
    %70 = vector.load %arg9[%c0_73, %c2_74, %c5] : memref<4x8x17xf32, #tpu.memory_space<vmem>>, vector<4x1x8xf32>
    %c0_75 = arith.constant 0 : index
    %c2_76 = arith.constant 2 : index
    %c0_77 = arith.constant 0 : index
    %71 = vector.load %arg10[%c0_75, %c2_76, %c0_77] : memref<4x8x8xf32, #tpu.memory_space<vmem>>, vector<4x1x8xf32>
    tpu.vector_store %arg10[%c0_75, %c2_76, %c0_77], %70 {strides = array<i32>} : memref<4x8x8xf32, #tpu.memory_space<vmem>>, vector<4x1x8xf32>,
    %c0_78 = arith.constant 0 : index
    %c3_79 = arith.constant 3 : index
    %c4 = arith.constant 4 : index
    %72 = vector.load %arg9[%c0_78, %c3_79, %c4] : memref<4x8x17xf32, #tpu.memory_space<vmem>>, vector<4x1x8xf32>
    %c0_80 = arith.constant 0 : index
    %c3_81 = arith.constant 3 : index
    %c0_82 = arith.constant 0 : index
    %73 = vector.load %arg10[%c0_80, %c3_81, %c0_82] : memref<4x8x8xf32, #tpu.memory_space<vmem>>, vector<4x1x8xf32>
    tpu.vector_store %arg10[%c0_80, %c3_81, %c0_82], %72 {strides = array<i32>} : memref<4x8x8xf32, #tpu.memory_space<vmem>>, vector<4x1x8xf32>,
    %c0_83 = arith.constant 0 : index
    %c4_84 = arith.constant 4 : index
    %c3_85 = arith.constant 3 : index
    %74 = vector.load %arg9[%c0_83, %c4_84, %c3_85] : memref<4x8x17xf32, #tpu.memory_space<vmem>>, vector<4x1x8xf32>
    %c0_86 = arith.constant 0 : index
    %c4_87 = arith.constant 4 : index
    %c0_88 = arith.constant 0 : index
    %75 = vector.load %arg10[%c0_86, %c4_87, %c0_88] : memref<4x8x8xf32, #tpu.memory_space<vmem>>, vector<4x1x8xf32>
    tpu.vector_store %arg10[%c0_86, %c4_87, %c0_88], %74 {strides = array<i32>} : memref<4x8x8xf32, #tpu.memory_space<vmem>>, vector<4x1x8xf32>,
    %c0_89 = arith.constant 0 : index
    %c5_90 = arith.constant 5 : index
    %c2_91 = arith.constant 2 : index
    %76 = vector.load %arg9[%c0_89, %c5_90, %c2_91] : memref<4x8x17xf32, #tpu.memory_space<vmem>>, vector<4x1x8xf32>
    %c0_92 = arith.constant 0 : index
    %c5_93 = arith.constant 5 : index
    %c0_94 = arith.constant 0 : index
    %77 = vector.load %arg10[%c0_92, %c5_93, %c0_94] : memref<4x8x8xf32, #tpu.memory_space<vmem>>, vector<4x1x8xf32>
    tpu.vector_store %arg10[%c0_92, %c5_93, %c0_94], %76 {strides = array<i32>} : memref<4x8x8xf32, #tpu.memory_space<vmem>>, vector<4x1x8xf32>,
    %c0_95 = arith.constant 0 : index
    %c6_96 = arith.constant 6 : index
    %c1_97 = arith.constant 1 : index
    %78 = vector.load %arg9[%c0_95, %c6_96, %c1_97] : memref<4x8x17xf32, #tpu.memory_space<vmem>>, vector<4x1x8xf32>
    %c0_98 = arith.constant 0 : index
    %c6_99 = arith.constant 6 : index
    %c0_100 = arith.constant 0 : index
    %79 = vector.load %arg10[%c0_98, %c6_99, %c0_100] : memref<4x8x8xf32, #tpu.memory_space<vmem>>, vector<4x1x8xf32>
    tpu.vector_store %arg10[%c0_98, %c6_99, %c0_100], %78 {strides = array<i32>} : memref<4x8x8xf32, #tpu.memory_space<vmem>>, vector<4x1x8xf32>,
    %c0_101 = arith.constant 0 : index
    %c7_102 = arith.constant 7 : index
    %c0_103 = arith.constant 0 : index
    %80 = vector.load %arg9[%c0_101, %c7_102, %c0_103] : memref<4x8x17xf32, #tpu.memory_space<vmem>>, vector<4x1x8xf32>
    %c0_104 = arith.constant 0 : index
    %c7_105 = arith.constant 7 : index
    %c0_106 = arith.constant 0 : index
    %81 = vector.load %arg10[%c0_104, %c7_105, %c0_106] : memref<4x8x8xf32, #tpu.memory_space<vmem>>, vector<4x1x8xf32>
    tpu.vector_store %arg10[%c0_104, %c7_105, %c0_106], %80 {strides = array<i32>} : memref<4x8x8xf32, #tpu.memory_space<vmem>>, vector<4x1x8xf32>,
    %c0_107 = arith.constant 0 : index
    %c0_108 = arith.constant 0 : index
    %c0_109 = arith.constant 0 : index
    %c0_110 = arith.constant 0 : index
    %82 = vector.load %arg2[%c0_107, %c0_108, %c0_109, %c0_110] : memref<1x4x8x8xf32, #tpu.memory_space<vmem>>, vector<1x1x8x8xf32>
    %83 = vector.shape_cast %82 : vector<1x1x8x8xf32> to vector<8x8xf32>
    %c0_111 = arith.constant 0 : index
    %c0_112 = arith.constant 0 : index
    %84 = vector.load %arg6[%c0_111, %c0_112] : memref<4x8xf32, #tpu.memory_space<vmem>>, vector<1x8xf32>
    %85 = vector.broadcast %84 : vector<1x8xf32> to vector<8x8xf32>
    %86 = arith.addf %83, %85 : vector<8x8xf32>
    %cst_113 = arith.constant 0.353553385 : f32
    %87 = vector.broadcast %cst_113 : f32 to vector<8x8xf32>
    %88 = arith.mulf %86, %87 : vector<8x8xf32>
    %89 = arith.truncf %88 : vector<8x8xf32> to vector<8x8xbf16>
    %c0_114 = arith.constant 0 : index
    %c0_115 = arith.constant 0 : index
    %c0_116 = arith.constant 0 : index
    %c0_117 = arith.constant 0 : index
    %90 = vector.load %arg3[%c0_114, %c0_115, %c0_116, %c0_117] : memref<1x4x8x8xf32, #tpu.memory_space<vmem>>, vector<1x1x8x8xf32>
    %91 = vector.shape_cast %90 : vector<1x1x8x8xf32> to vector<8x8xf32>
    %92 = arith.truncf %91 : vector<8x8xf32> to vector<8x8xbf16>
    %cst_118 = arith.constant dense<0.000000e+00> : vector<8x8xf32>
    %93 = tpu.matmul %89, %92, %cst_118 {dimension_numbers = #tpu.dot_dimension_numbers<[1], [1], [0], [0], [0, 0, 1, 0], [], []>} : vector<8x8xbf16>, vector<8x8xbf16>, vector<8x8xf32> -> vector<8x8xf32>
    %c0_119 = arith.constant 0 : index
    %c0_120 = arith.constant 0 : index
    %c0_121 = arith.constant 0 : index
    %94 = vector.load %arg10[%c0_119, %c0_120, %c0_121] : memref<4x8x8xf32, #tpu.memory_space<vmem>>, vector<1x8x8xf32>
    %95 = vector.shape_cast %94 : vector<1x8x8xf32> to vector<8x8xf32>
    %96 = arith.addf %93, %95 : vector<8x8xf32>
    %cst_122 = arith.constant dense<0xFF800000> : vector<8xf32>
    %97 = vector.multi_reduction <maximumf>, %96, %cst_122 [1] : vector<8x8xf32> to vector<8xf32>
    %98 = vector.shape_cast %97 : vector<8xf32> to vector<8x1xf32>
    %99 = vector.broadcast %98 : vector<8x1xf32> to vector<8x8xf32>
    %100 = arith.subf %96, %99 : vector<8x8xf32>
    %101 = math.exp %100 : vector<8x8xf32>
    %cst_123 = arith.constant dense<0.000000e+00> : vector<8xf32>
    %102 = vector.multi_reduction <add>, %101, %cst_123 [1] : vector<8x8xf32> to vector<8xf32>
    %103 = vector.shape_cast %102 : vector<8xf32> to vector<8x1xf32>
    %104 = tpu.reciprocal %103 {approx = true} : vector<8x1xf32> -> vector<8x1xf32>
    %105 = vector.broadcast %104 : vector<8x1xf32> to vector<8x8xf32>
    %106 = arith.mulf %101, %105 : vector<8x8xf32>
    %107 = arith.truncf %106 : vector<8x8xf32> to vector<8x8xbf16>
    %c0_124 = arith.constant 0 : index
    %c0_125 = arith.constant 0 : index
    %c0_126 = arith.constant 0 : index
    %c0_127 = arith.constant 0 : index
    %108 = vector.load %arg4[%c0_124, %c0_125, %c0_126, %c0_127] : memref<1x4x8x8xf32, #tpu.memory_space<vmem>>, vector<1x1x8x8xf32>
    %109 = vector.shape_cast %108 : vector<1x1x8x8xf32> to vector<8x8xf32>
    %110 = arith.truncf %109 : vector<8x8xf32> to vector<8x8xbf16>
    %cst_128 = arith.constant dense<0.000000e+00> : vector<8x8xf32>
    %111 = tpu.matmul %107, %110, %cst_128 {dimension_numbers = #tpu.dot_dimension_numbers<[1], [0], [0], [1], [0, 0, 1, 1], [], []>} : vector<8x8xbf16>, vector<8x8xbf16>, vector<8x8xf32> -> vector<8x8xf32>
    %c0_129 = arith.constant 0 : index
    %c0_130 = arith.constant 0 : index
    %c0_131 = arith.constant 0 : index
    %c0_132 = arith.constant 0 : index
    %112 = vector.load %arg8[%c0_129, %c0_130, %c0_131, %c0_132] : memref<1x4x8x8xf32, #tpu.memory_space<vmem>>, vector<1x1x8x8xf32>
    %113 = vector.shape_cast %112 : vector<1x1x8x8xf32> to vector<8x8xf32>
    %114 = vector.shape_cast %111 : vector<8x8xf32> to vector<1x1x8x8xf32>
    tpu.vector_store %arg8[%c0_129, %c0_130, %c0_131, %c0_132], %114 {strides = array<i32>} : memref<1x4x8x8xf32, #tpu.memory_space<vmem>>, vector<1x1x8x8xf32>,
    %c0_133 = arith.constant 0 : index
    %c1_134 = arith.constant 1 : index
    %c0_135 = arith.constant 0 : index
    %c0_136 = arith.constant 0 : index
    %115 = vector.load %arg2[%c0_133, %c1_134, %c0_135, %c0_136] : memref<1x4x8x8xf32, #tpu.memory_space<vmem>>, vector<1x1x8x8xf32>
    %116 = vector.shape_cast %115 : vector<1x1x8x8xf32> to vector<8x8xf32>
    %c1_137 = arith.constant 1 : index
    %c0_138 = arith.constant 0 : index
    %117 = vector.load %arg6[%c1_137, %c0_138] : memref<4x8xf32, #tpu.memory_space<vmem>>, vector<1x8xf32>
    %118 = vector.broadcast %117 : vector<1x8xf32> to vector<8x8xf32>
    %119 = arith.addf %116, %118 : vector<8x8xf32>
    %cst_139 = arith.constant 0.353553385 : f32
    %120 = vector.broadcast %cst_139 : f32 to vector<8x8xf32>
    %121 = arith.mulf %119, %120 : vector<8x8xf32>
    %122 = arith.truncf %121 : vector<8x8xf32> to vector<8x8xbf16>
    %c0_140 = arith.constant 0 : index
    %c1_141 = arith.constant 1 : index
    %c0_142 = arith.constant 0 : index
    %c0_143 = arith.constant 0 : index
    %123 = vector.load %arg3[%c0_140, %c1_141, %c0_142, %c0_143] : memref<1x4x8x8xf32, #tpu.memory_space<vmem>>, vector<1x1x8x8xf32>
    %124 = vector.shape_cast %123 : vector<1x1x8x8xf32> to vector<8x8xf32>
    %125 = arith.truncf %124 : vector<8x8xf32> to vector<8x8xbf16>
    %cst_144 = arith.constant dense<0.000000e+00> : vector<8x8xf32>
    %126 = tpu.matmul %122, %125, %cst_144 {dimension_numbers = #tpu.dot_dimension_numbers<[1], [1], [0], [0], [0, 0, 1, 0], [], []>} : vector<8x8xbf16>, vector<8x8xbf16>, vector<8x8xf32> -> vector<8x8xf32>
    %c1_145 = arith.constant 1 : index
    %c0_146 = arith.constant 0 : index
    %c0_147 = arith.constant 0 : index
    %127 = vector.load %arg10[%c1_145, %c0_146, %c0_147] : memref<4x8x8xf32, #tpu.memory_space<vmem>>, vector<1x8x8xf32>
    %128 = vector.shape_cast %127 : vector<1x8x8xf32> to vector<8x8xf32>
    %129 = arith.addf %126, %128 : vector<8x8xf32>
    %cst_148 = arith.constant dense<0xFF800000> : vector<8xf32>
    %130 = vector.multi_reduction <maximumf>, %129, %cst_148 [1] : vector<8x8xf32> to vector<8xf32>
    %131 = vector.shape_cast %130 : vector<8xf32> to vector<8x1xf32>
    %132 = vector.broadcast %131 : vector<8x1xf32> to vector<8x8xf32>
    %133 = arith.subf %129, %132 : vector<8x8xf32>
    %134 = math.exp %133 : vector<8x8xf32>
    %cst_149 = arith.constant dense<0.000000e+00> : vector<8xf32>
    %135 = vector.multi_reduction <add>, %134, %cst_149 [1] : vector<8x8xf32> to vector<8xf32>
    %136 = vector.shape_cast %135 : vector<8xf32> to vector<8x1xf32>
    %137 = tpu.reciprocal %136 {approx = true} : vector<8x1xf32> -> vector<8x1xf32>
    %138 = vector.broadcast %137 : vector<8x1xf32> to vector<8x8xf32>
    %139 = arith.mulf %134, %138 : vector<8x8xf32>
    %140 = arith.truncf %139 : vector<8x8xf32> to vector<8x8xbf16>
    %c0_150 = arith.constant 0 : index
    %c1_151 = arith.constant 1 : index
    %c0_152 = arith.constant 0 : index
    %c0_153 = arith.constant 0 : index
    %141 = vector.load %arg4[%c0_150, %c1_151, %c0_152, %c0_153] : memref<1x4x8x8xf32, #tpu.memory_space<vmem>>, vector<1x1x8x8xf32>
    %142 = vector.shape_cast %141 : vector<1x1x8x8xf32> to vector<8x8xf32>
    %143 = arith.truncf %142 : vector<8x8xf32> to vector<8x8xbf16>
    %cst_154 = arith.constant dense<0.000000e+00> : vector<8x8xf32>
    %144 = tpu.matmul %140, %143, %cst_154 {dimension_numbers = #tpu.dot_dimension_numbers<[1], [0], [0], [1], [0, 0, 1, 1], [], []>} : vector<8x8xbf16>, vector<8x8xbf16>, vector<8x8xf32> -> vector<8x8xf32>
    %c0_155 = arith.constant 0 : index
    %c1_156 = arith.constant 1 : index
    %c0_157 = arith.constant 0 : index
    %c0_158 = arith.constant 0 : index
    %145 = vector.load %arg8[%c0_155, %c1_156, %c0_157, %c0_158] : memref<1x4x8x8xf32, #tpu.memory_space<vmem>>, vector<1x1x8x8xf32>
    %146 = vector.shape_cast %145 : vector<1x1x8x8xf32> to vector<8x8xf32>
    %147 = vector.shape_cast %144 : vector<8x8xf32> to vector<1x1x8x8xf32>
    tpu.vector_store %arg8[%c0_155, %c1_156, %c0_157, %c0_158], %147 {strides = array<i32>} : memref<1x4x8x8xf32, #tpu.memory_space<vmem>>, vector<1x1x8x8xf32>,
    %c0_159 = arith.constant 0 : index
    %c2_160 = arith.constant 2 : index
    %c0_161 = arith.constant 0 : index
    %c0_162 = arith.constant 0 : index
    %148 = vector.load %arg2[%c0_159, %c2_160, %c0_161, %c0_162] : memref<1x4x8x8xf32, #tpu.memory_space<vmem>>, vector<1x1x8x8xf32>
    %149 = vector.shape_cast %148 : vector<1x1x8x8xf32> to vector<8x8xf32>
    %c2_163 = arith.constant 2 : index
    %c0_164 = arith.constant 0 : index
    %150 = vector.load %arg6[%c2_163, %c0_164] : memref<4x8xf32, #tpu.memory_space<vmem>>, vector<1x8xf32>
    %151 = vector.broadcast %150 : vector<1x8xf32> to vector<8x8xf32>
    %152 = arith.addf %149, %151 : vector<8x8xf32>
    %cst_165 = arith.constant 0.353553385 : f32
    %153 = vector.broadcast %cst_165 : f32 to vector<8x8xf32>
    %154 = arith.mulf %152, %153 : vector<8x8xf32>
    %155 = arith.truncf %154 : vector<8x8xf32> to vector<8x8xbf16>
    %c0_166 = arith.constant 0 : index
    %c2_167 = arith.constant 2 : index
    %c0_168 = arith.constant 0 : index
    %c0_169 = arith.constant 0 : index
    %156 = vector.load %arg3[%c0_166, %c2_167, %c0_168, %c0_169] : memref<1x4x8x8xf32, #tpu.memory_space<vmem>>, vector<1x1x8x8xf32>
    %157 = vector.shape_cast %156 : vector<1x1x8x8xf32> to vector<8x8xf32>
    %158 = arith.truncf %157 : vector<8x8xf32> to vector<8x8xbf16>
    %cst_170 = arith.constant dense<0.000000e+00> : vector<8x8xf32>
    %159 = tpu.matmul %155, %158, %cst_170 {dimension_numbers = #tpu.dot_dimension_numbers<[1], [1], [0], [0], [0, 0, 1, 0], [], []>} : vector<8x8xbf16>, vector<8x8xbf16>, vector<8x8xf32> -> vector<8x8xf32>
    %c2_171 = arith.constant 2 : index
    %c0_172 = arith.constant 0 : index
    %c0_173 = arith.constant 0 : index
    %160 = vector.load %arg10[%c2_171, %c0_172, %c0_173] : memref<4x8x8xf32, #tpu.memory_space<vmem>>, vector<1x8x8xf32>
    %161 = vector.shape_cast %160 : vector<1x8x8xf32> to vector<8x8xf32>
    %162 = arith.addf %159, %161 : vector<8x8xf32>
    %cst_174 = arith.constant dense<0xFF800000> : vector<8xf32>
    %163 = vector.multi_reduction <maximumf>, %162, %cst_174 [1] : vector<8x8xf32> to vector<8xf32>
    %164 = vector.shape_cast %163 : vector<8xf32> to vector<8x1xf32>
    %165 = vector.broadcast %164 : vector<8x1xf32> to vector<8x8xf32>
    %166 = arith.subf %162, %165 : vector<8x8xf32>
    %167 = math.exp %166 : vector<8x8xf32>
    %cst_175 = arith.constant dense<0.000000e+00> : vector<8xf32>
    %168 = vector.multi_reduction <add>, %167, %cst_175 [1] : vector<8x8xf32> to vector<8xf32>
    %169 = vector.shape_cast %168 : vector<8xf32> to vector<8x1xf32>
    %170 = tpu.reciprocal %169 {approx = true} : vector<8x1xf32> -> vector<8x1xf32>
    %171 = vector.broadcast %170 : vector<8x1xf32> to vector<8x8xf32>
    %172 = arith.mulf %167, %171 : vector<8x8xf32>
    %173 = arith.truncf %172 : vector<8x8xf32> to vector<8x8xbf16>
    %c0_176 = arith.constant 0 : index
    %c2_177 = arith.constant 2 : index
    %c0_178 = arith.constant 0 : index
    %c0_179 = arith.constant 0 : index
    %174 = vector.load %arg4[%c0_176, %c2_177, %c0_178, %c0_179] : memref<1x4x8x8xf32, #tpu.memory_space<vmem>>, vector<1x1x8x8xf32>
    %175 = vector.shape_cast %174 : vector<1x1x8x8xf32> to vector<8x8xf32>
    %176 = arith.truncf %175 : vector<8x8xf32> to vector<8x8xbf16>
    %cst_180 = arith.constant dense<0.000000e+00> : vector<8x8xf32>
    %177 = tpu.matmul %173, %176, %cst_180 {dimension_numbers = #tpu.dot_dimension_numbers<[1], [0], [0], [1], [0, 0, 1, 1], [], []>} : vector<8x8xbf16>, vector<8x8xbf16>, vector<8x8xf32> -> vector<8x8xf32>
    %c0_181 = arith.constant 0 : index
    %c2_182 = arith.constant 2 : index
    %c0_183 = arith.constant 0 : index
    %c0_184 = arith.constant 0 : index
    %178 = vector.load %arg8[%c0_181, %c2_182, %c0_183, %c0_184] : memref<1x4x8x8xf32, #tpu.memory_space<vmem>>, vector<1x1x8x8xf32>
    %179 = vector.shape_cast %178 : vector<1x1x8x8xf32> to vector<8x8xf32>
    %180 = vector.shape_cast %177 : vector<8x8xf32> to vector<1x1x8x8xf32>
    tpu.vector_store %arg8[%c0_181, %c2_182, %c0_183, %c0_184], %180 {strides = array<i32>} : memref<1x4x8x8xf32, #tpu.memory_space<vmem>>, vector<1x1x8x8xf32>,
    %c0_185 = arith.constant 0 : index
    %c3_186 = arith.constant 3 : index
    %c0_187 = arith.constant 0 : index
    %c0_188 = arith.constant 0 : index
    %181 = vector.load %arg2[%c0_185, %c3_186, %c0_187, %c0_188] : memref<1x4x8x8xf32, #tpu.memory_space<vmem>>, vector<1x1x8x8xf32>
    %182 = vector.shape_cast %181 : vector<1x1x8x8xf32> to vector<8x8xf32>
    %c3_189 = arith.constant 3 : index
    %c0_190 = arith.constant 0 : index
    %183 = vector.load %arg6[%c3_189, %c0_190] : memref<4x8xf32, #tpu.memory_space<vmem>>, vector<1x8xf32>
    %184 = vector.broadcast %183 : vector<1x8xf32> to vector<8x8xf32>
    %185 = arith.addf %182, %184 : vector<8x8xf32>
    %cst_191 = arith.constant 0.353553385 : f32
    %186 = vector.broadcast %cst_191 : f32 to vector<8x8xf32>
    %187 = arith.mulf %185, %186 : vector<8x8xf32>
    %188 = arith.truncf %187 : vector<8x8xf32> to vector<8x8xbf16>
    %c0_192 = arith.constant 0 : index
    %c3_193 = arith.constant 3 : index
    %c0_194 = arith.constant 0 : index
    %c0_195 = arith.constant 0 : index
    %189 = vector.load %arg3[%c0_192, %c3_193, %c0_194, %c0_195] : memref<1x4x8x8xf32, #tpu.memory_space<vmem>>, vector<1x1x8x8xf32>
    %190 = vector.shape_cast %189 : vector<1x1x8x8xf32> to vector<8x8xf32>
    %191 = arith.truncf %190 : vector<8x8xf32> to vector<8x8xbf16>
    %cst_196 = arith.constant dense<0.000000e+00> : vector<8x8xf32>
    %192 = tpu.matmul %188, %191, %cst_196 {dimension_numbers = #tpu.dot_dimension_numbers<[1], [1], [0], [0], [0, 0, 1, 0], [], []>} : vector<8x8xbf16>, vector<8x8xbf16>, vector<8x8xf32> -> vector<8x8xf32>
    %c3_197 = arith.constant 3 : index
    %c0_198 = arith.constant 0 : index
    %c0_199 = arith.constant 0 : index
    %193 = vector.load %arg10[%c3_197, %c0_198, %c0_199] : memref<4x8x8xf32, #tpu.memory_space<vmem>>, vector<1x8x8xf32>
    %194 = vector.shape_cast %193 : vector<1x8x8xf32> to vector<8x8xf32>
    %195 = arith.addf %192, %194 : vector<8x8xf32>
    %cst_200 = arith.constant dense<0xFF800000> : vector<8xf32>
    %196 = vector.multi_reduction <maximumf>, %195, %cst_200 [1] : vector<8x8xf32> to vector<8xf32>
    %197 = vector.shape_cast %196 : vector<8xf32> to vector<8x1xf32>
    %198 = vector.broadcast %197 : vector<8x1xf32> to vector<8x8xf32>
    %199 = arith.subf %195, %198 : vector<8x8xf32>
    %200 = math.exp %199 : vector<8x8xf32>
    %cst_201 = arith.constant dense<0.000000e+00> : vector<8xf32>
    %201 = vector.multi_reduction <add>, %200, %cst_201 [1] : vector<8x8xf32> to vector<8xf32>
    %202 = vector.shape_cast %201 : vector<8xf32> to vector<8x1xf32>
    %203 = tpu.reciprocal %202 {approx = true} : vector<8x1xf32> -> vector<8x1xf32>
    %204 = vector.broadcast %203 : vector<8x1xf32> to vector<8x8xf32>
    %205 = arith.mulf %200, %204 : vector<8x8xf32>
    %206 = arith.truncf %205 : vector<8x8xf32> to vector<8x8xbf16>
    %c0_202 = arith.constant 0 : index
    %c3_203 = arith.constant 3 : index
    %c0_204 = arith.constant 0 : index
    %c0_205 = arith.constant 0 : index
    %207 = vector.load %arg4[%c0_202, %c3_203, %c0_204, %c0_205] : memref<1x4x8x8xf32, #tpu.memory_space<vmem>>, vector<1x1x8x8xf32>
    %208 = vector.shape_cast %207 : vector<1x1x8x8xf32> to vector<8x8xf32>
    %209 = arith.truncf %208 : vector<8x8xf32> to vector<8x8xbf16>
    %cst_206 = arith.constant dense<0.000000e+00> : vector<8x8xf32>
    %210 = tpu.matmul %206, %209, %cst_206 {dimension_numbers = #tpu.dot_dimension_numbers<[1], [0], [0], [1], [0, 0, 1, 1], [], []>} : vector<8x8xbf16>, vector<8x8xbf16>, vector<8x8xf32> -> vector<8x8xf32>
    %c0_207 = arith.constant 0 : index
    %c3_208 = arith.constant 3 : index
    %c0_209 = arith.constant 0 : index
    %c0_210 = arith.constant 0 : index
    %211 = vector.load %arg8[%c0_207, %c3_208, %c0_209, %c0_210] : memref<1x4x8x8xf32, #tpu.memory_space<vmem>>, vector<1x1x8x8xf32>
    %212 = vector.shape_cast %211 : vector<1x1x8x8xf32> to vector<8x8xf32>
    %213 = vector.shape_cast %210 : vector<8x8xf32> to vector<1x1x8x8xf32>
    tpu.vector_store %arg8[%c0_207, %c3_208, %c0_209, %c0_210], %213 {strides = array<i32>} : memref<1x4x8x8xf32, #tpu.memory_space<vmem>>, vector<1x1x8x8xf32>,
    return
  }
  func.func @transform_0(%arg0: i32, %arg1: i32) -> (i32, i32, i32, i32) {
    %c0_i32 = arith.constant 0 : i32
    %c0_i32_0 = arith.constant 0 : i32
    %c0_i32_1 = arith.constant 0 : i32
    return %arg1, %arg0, %c0_i32, %c0_i32_0 : i32, i32, i32, i32
  }
  func.func @transform_1(%arg0: i32, %arg1: i32) -> (i32, i32, i32, i32) {
    %c0_i32 = arith.constant 0 : i32
    %c0_i32_0 = arith.constant 0 : i32
    %c0_i32_1 = arith.constant 0 : i32
    return %arg1, %arg0, %c0_i32, %c0_i32_0 : i32, i32, i32, i32
  }
  func.func @transform_2(%arg0: i32, %arg1: i32) -> (i32, i32, i32, i32) {
    %c0_i32 = arith.constant 0 : i32
    %c0_i32_0 = arith.constant 0 : i32
    %c0_i32_1 = arith.constant 0 : i32
    return %arg1, %arg0, %c0_i32, %c0_i32_0 : i32, i32, i32, i32
  }
  func.func @transform_3(%arg0: i32, %arg1: i32) -> (i32, i32, i32) {
    %c0_i32 = arith.constant 0 : i32
    %c0_i32_0 = arith.constant 0 : i32
    %c0_i32_1 = arith.constant 0 : i32
    return %arg0, %c0_i32, %c0_i32_0 : i32, i32, i32
  }
  func.func @transform_4(%arg0: i32, %arg1: i32) -> (i32, i32) {
    %c0_i32 = arith.constant 0 : i32
    %c0_i32_0 = arith.constant 0 : i32
    return %arg0, %c0_i32 : i32, i32
  }
  func.func @transform_5(%arg0: i32, %arg1: i32) -> (i32, i32) {
    %c0_i32 = arith.constant 0 : i32
    %c0_i32_0 = arith.constant 0 : i32
    return %arg0, %c0_i32 : i32, i32
  }
  func.func @transform_6(%arg0: i32, %arg1: i32) -> (i32, i32, i32, i32) {
    %c0_i32 = arith.constant 0 : i32
    %c0_i32_0 = arith.constant 0 : i32
    %c0_i32_1 = arith.constant 0 : i32
    return %arg1, %arg0, %c0_i32, %c0_i32_0 : i32, i32, i32, i32
  }
}

module attributes {stable_mosaic.version = 11 : i64} {
  func.func @_out_ln_kernel(%arg0: i32, %arg1: memref<16x32xf32, #tpu.memory_space<vmem>>, %arg2: memref<16x32xf32, #tpu.memory_space<vmem>>, %arg3: memref<32x32xf32, #tpu.memory_space<vmem>>, %arg4: memref<1x32xf32, #tpu.memory_space<vmem>>, %arg5: memref<1x32xf32, #tpu.memory_space<vmem>>, %arg6: memref<16x32xf32, #tpu.memory_space<vmem>>) attributes {dimension_semantics = [#tpu.dimension_semantics<parallel>], iteration_bounds = array<i64: 1>, scalar_prefetch = 0 : i64, scratch_operands = 0 : i64, tpu.core_type = #tpu.core_type<tc>, window_params = [{transform_indices = @transform_0, window_bounds = array<i64: 16, 32>}, {transform_indices = @transform_1, window_bounds = array<i64: 16, 32>}, {pipeline_mode = #tpu.pipeline_mode<synchronous>, transform_indices = @transform_2, window_bounds = array<i64: 32, 32>}, {pipeline_mode = #tpu.pipeline_mode<synchronous>, transform_indices = @transform_3, window_bounds = array<i64: 1, 32>}, {pipeline_mode = #tpu.pipeline_mode<synchronous>, transform_indices = @transform_4, window_bounds = array<i64: 1, 32>}, {transform_indices = @transform_5, window_bounds = array<i64: 16, 32>}]} {
    %c0 = arith.constant 0 : index
    %c0_0 = arith.constant 0 : index
    %0 = vector.load %arg1[%c0, %c0_0] : memref<16x32xf32, #tpu.memory_space<vmem>>, vector<16x32xf32>
    %1 = arith.truncf %0 : vector<16x32xf32> to vector<16x32xbf16>
    %c0_1 = arith.constant 0 : index
    %c0_2 = arith.constant 0 : index
    %2 = vector.load %arg3[%c0_1, %c0_2] : memref<32x32xf32, #tpu.memory_space<vmem>>, vector<32x32xf32>
    %3 = arith.truncf %2 : vector<32x32xf32> to vector<32x32xbf16>
    %cst = arith.constant dense<0.000000e+00> : vector<16x32xf32>
    %4 = tpu.matmul %1, %3, %cst {dimension_numbers = #tpu.dot_dimension_numbers<[1], [0], [0], [1], [0, 0, 1, 1], [], []>} : vector<16x32xbf16>, vector<32x32xbf16>, vector<16x32xf32> -> vector<16x32xf32>
    %c0_3 = arith.constant 0 : index
    %c0_4 = arith.constant 0 : index
    %5 = vector.load %arg2[%c0_3, %c0_4] : memref<16x32xf32, #tpu.memory_space<vmem>>, vector<16x32xf32>
    %6 = arith.addf %5, %4 : vector<16x32xf32>
    %cst_5 = arith.constant dense<0.000000e+00> : vector<16xf32>
    %7 = vector.multi_reduction <add>, %6, %cst_5 [1] : vector<16x32xf32> to vector<16xf32>
    %8 = vector.shape_cast %7 : vector<16xf32> to vector<16x1xf32>
    %cst_6 = arith.constant 3.200000e+01 : f32
    %9 = vector.broadcast %cst_6 : f32 to vector<16x1xf32>
    %10 = arith.divf %8, %9 : vector<16x1xf32>
    %11 = vector.broadcast %10 : vector<16x1xf32> to vector<16x32xf32>
    %12 = arith.subf %6, %11 : vector<16x32xf32>
    %13 = arith.mulf %12, %12 : vector<16x32xf32>
    %cst_7 = arith.constant dense<0.000000e+00> : vector<16xf32>
    %14 = vector.multi_reduction <add>, %13, %cst_7 [1] : vector<16x32xf32> to vector<16xf32>
    %15 = vector.shape_cast %14 : vector<16xf32> to vector<16x1xf32>
    %cst_8 = arith.constant 3.200000e+01 : f32
    %16 = vector.broadcast %cst_8 : f32 to vector<16x1xf32>
    %17 = arith.divf %15, %16 : vector<16x1xf32>
    %18 = vector.broadcast %10 : vector<16x1xf32> to vector<16x32xf32>
    %19 = arith.subf %6, %18 : vector<16x32xf32>
    %cst_9 = arith.constant 9.99999974E-6 : f32
    %20 = vector.broadcast %cst_9 : f32 to vector<16x1xf32>
    %21 = arith.addf %17, %20 : vector<16x1xf32>
    %22 = math.rsqrt %21 : vector<16x1xf32>
    %23 = vector.broadcast %22 : vector<16x1xf32> to vector<16x32xf32>
    %24 = arith.mulf %19, %23 : vector<16x32xf32>
    %c0_10 = arith.constant 0 : index
    %c0_11 = arith.constant 0 : index
    %25 = vector.load %arg4[%c0_10, %c0_11] : memref<1x32xf32, #tpu.memory_space<vmem>>, vector<1x32xf32>
    %26 = vector.broadcast %25 : vector<1x32xf32> to vector<16x32xf32>
    %27 = arith.mulf %24, %26 : vector<16x32xf32>
    %c0_12 = arith.constant 0 : index
    %c0_13 = arith.constant 0 : index
    %28 = vector.load %arg5[%c0_12, %c0_13] : memref<1x32xf32, #tpu.memory_space<vmem>>, vector<1x32xf32>
    %29 = vector.broadcast %28 : vector<1x32xf32> to vector<16x32xf32>
    %30 = arith.addf %27, %29 : vector<16x32xf32>
    %c0_14 = arith.constant 0 : index
    %c0_15 = arith.constant 0 : index
    %31 = vector.load %arg6[%c0_14, %c0_15] : memref<16x32xf32, #tpu.memory_space<vmem>>, vector<16x32xf32>
    tpu.vector_store %arg6[%c0_14, %c0_15], %30 {strides = array<i32>} : memref<16x32xf32, #tpu.memory_space<vmem>>, vector<16x32xf32>,
    return
  }
  func.func @transform_0(%arg0: i32) -> (i32, i32) {
    %c0_i32 = arith.constant 0 : i32
    %c0_i32_0 = arith.constant 0 : i32
    return %arg0, %c0_i32 : i32, i32
  }
  func.func @transform_1(%arg0: i32) -> (i32, i32) {
    %c0_i32 = arith.constant 0 : i32
    %c0_i32_0 = arith.constant 0 : i32
    return %arg0, %c0_i32 : i32, i32
  }
  func.func @transform_2(%arg0: i32) -> (i32, i32) {
    %c0_i32 = arith.constant 0 : i32
    %c0_i32_0 = arith.constant 0 : i32
    %c0_i32_1 = arith.constant 0 : i32
    return %c0_i32, %c0_i32_0 : i32, i32
  }
  func.func @transform_3(%arg0: i32) -> (i32, i32) {
    %c0_i32 = arith.constant 0 : i32
    %c0_i32_0 = arith.constant 0 : i32
    %c0_i32_1 = arith.constant 0 : i32
    return %c0_i32, %c0_i32_0 : i32, i32
  }
  func.func @transform_4(%arg0: i32) -> (i32, i32) {
    %c0_i32 = arith.constant 0 : i32
    %c0_i32_0 = arith.constant 0 : i32
    %c0_i32_1 = arith.constant 0 : i32
    return %c0_i32, %c0_i32_0 : i32, i32
  }
  func.func @transform_5(%arg0: i32) -> (i32, i32) {
    %c0_i32 = arith.constant 0 : i32
    %c0_i32_0 = arith.constant 0 : i32
    return %arg0, %c0_i32 : i32, i32
  }
}

</mosaic_0001>

<llo_original>
// kernel: rel_attn_forward.4
$region0: #{rel_attn_forward.4}
  #allocation0 [shape = 'u32[]', space=smem, size = 0x4, offset = 0x4, fixed_abs, tag = 'smem constant byte address 0x4 - core index']
  #allocation1 [shape = 'u32[72,128]{1,0:T(1,128)}', space=vmem, size = 0x9000, scoped, tag = 'internal scratch']
  #allocation2 [shape = 'f32[16,96]{1,0:T(8,128)}', space=vmem, size = 0x2000, scoped, tag = 'scratch operand']
  %s0 = inlined_call_operand.hbm [shape: f32[16,32], index: 0, kind: input, shape index: {}]
  %s1 = inlined_call_operand.hbm [shape: f32[32,96], index: 1, kind: input, shape index: {}]
  %s2 = inlined_call_operand.vmem [shape: f32[16,96], index: 2, kind: output, shape index: {}]
  %s3 = sld [smem:[#allocation0]]
  $region34: #{rel_attn_forward.4} parent=0
    _
  %s5 = ssub.s32 1, %s3
  %s6 = scalar_select 0, %s5, %s3
  $region1: #{rel_attn_forward.4} parent=0
    #allocation3 [shape = 'u8[8192]{0}', space=vmem, size = 0x2000, scoped, tag = 'input window, operand 0, single buffered']
    #allocation4 [shape = 's32[1]{0}', space=sflag, size = 0x4, scoped, tag = 'scoped memory for rel_attn_forward.4']
    #allocation5 [shape = 'u8[16384]{0}', space=vmem, size = 0x4000, scoped, tag = 'input window, operand 1, single buffered']
    #allocation6 [shape = 's32[1]{0}', space=sflag, size = 0x4, scoped, tag = 'scoped memory for rel_attn_forward.4']
    %7 = vsyncpa [#allocation4], 0
    %8 = vsyncpa [#allocation6], 0
    // Predicated region
    $region2: #{rel_attn_forward.4} parent=1 // pred_check
      _
    $region3: #{rel_attn_forward.4} parent=1 // pred_check_branch
      %10 = sbr.rel (0) target = $region5
    $region4: #{rel_attn_forward.4} parent=1 // pred_region
      %12 = vsyncadd [#allocation4], 0
      %s13 = sshll.u32 %s0, 4
      %s14 = int_to_ptr.hbm [resolvable:$true] %s13
      %s15 = sshll.u32 [#allocation3], 4
      %s16 = int_to_ptr.vmem [resolvable:$true] %s15
      %21 = dma.hbm_to_vmem [thread:$0]  %s14, 256, %s16, [#allocation4], 128, 128, 8
    $region5: #{rel_attn_forward.4} parent=1 // pred_fallthru
      _
    // Predicated region
    $region6: #{rel_attn_forward.4} parent=1 // pred_check
      _
    $region7: #{rel_attn_forward.4} parent=1 // pred_check_branch
      %23 = sbr.rel (0) target = $region9
    $region8: #{rel_attn_forward.4} parent=1 // pred_region
      %25 = vsyncadd [#allocation6], 0
      %s26 = sshll.u32 %s1, 4
      %s27 = int_to_ptr.hbm [resolvable:$true] %s26
      %s28 = sshll.u32 [#allocation5], 4
      %s29 = int_to_ptr.vmem [resolvable:$true] %s28
      %34 = dma.hbm_to_vmem [thread:$0]  %s27, 512, %s29, [#allocation6], 128, 128, 8
    $region9: #{rel_attn_forward.4} parent=1 // pred_fallthru
      _
    // Predicated region
    $region10: #{rel_attn_forward.4} parent=1 // pred_check
      _
    $region11: #{rel_attn_forward.4} parent=1 // pred_check_branch
      %36 = sbr.rel (0) target = $region13
    $region12: #{rel_attn_forward.4} parent=1 // pred_region
      %38 = dma.done [#allocation4], 256
    $region13: #{rel_attn_forward.4} parent=1 // pred_fallthru
      _
    // Predicated region
    $region14: #{rel_attn_forward.4} parent=1 // pred_check
      _
    $region15: #{rel_attn_forward.4} parent=1 // pred_check_branch
      %40 = sbr.rel (0) target = $region17
    $region16: #{rel_attn_forward.4} parent=1 // pred_region
      %42 = dma.done [#allocation6], 512
    $region17: #{rel_attn_forward.4} parent=1 // pred_fallthru
      _
    %p44 = scmp.eq.s32.totalorder 0, 0
    // Predicated region
    $region18: #{rel_attn_forward.4} parent=1 // pred_check
      %p45 = pneg %p44
    $region19: #{rel_attn_forward.4} parent=1 // pred_check_branch
      %47 = sbr.rel (%p45) target = $region21
    $region20: #{rel_attn_forward.4} parent=1 // pred_region
      %vm48 = vcmask 785408
      %49 = vst.msk [vmem:[#allocation2] sm:$0xff] %vm48, 0.0
      %50 = vst.msk [vmem:[#allocation2 + $0x8] sm:$0xff] %vm48, 0.0
    $region21: #{rel_attn_forward.4} parent=1 // pred_fallthru
      _
    %v51 = vld [vmem:[#allocation2] sm:$0xff]
    %v52 = vld [vmem:[#allocation2 + $0x8] sm:$0xff]
    %v53 = vld [vmem:[#allocation3] sm:$0xff]
    %v54 = vld [vmem:[#allocation3 + $0x8] sm:$0xff]
    %v55 = vpack.c.bf16 %v54, %v53
    %v56 = vld [vmem:[#allocation5] sm:$0xff]
    %v57 = vld [vmem:[#allocation5 + $0x8] sm:$0xff]
    %v58 = vld [vmem:[#allocation5 + $0x10] sm:$0xff]
    %v59 = vld [vmem:[#allocation5 + $0x18] sm:$0xff]
    %v60 = vpack.c.bf16 %v57, %v56
    %v61 = vpack.c.bf16 %v59, %v58
    %vm62 = vcmask 261120
    %v64 = vsel %vm62, %v55, 0
    %66 = vmatpush.bf16.msra.mxu0 0
    %67 = vmatpush.bf16.msra.mxu0 0
    %68 = vmatpush.bf16.msra.mxu0 0
    %69 = vmatpush.bf16.msra.mxu0 0
    %70 = vmatpush.bf16.msra.mxu0 0
    %71 = vmatpush.bf16.msra.mxu0 0
    %72 = vmatpush.bf16.msra.mxu0 %v61
    %73 = vmatpush.bf16.msra.mxu0 %v60
    %74 = vmatmul.bf16.gmra.mxu0 %v64
    %v75 = vpop.f32.mrf.mxu0
    %v76 = vadd.f32 0.0, %v75
    %v77 = vpop.f32.mrf.mxu0
    %v78 = vadd.f32 0.0, %v77
    %79 = vdwg.mxu0
    %v80 = vadd.f32 %v51, %v76
    %v81 = vadd.f32 %v52, %v78
    %vm82 = vcmask 785408
    %83 = vst.msk [vmem:[#allocation2] sm:$0xff] %vm82, %v80
    %84 = vst.msk [vmem:[#allocation2 + $0x8] sm:$0xff] %vm82, %v81
    // Predicated region
    $region22: #{rel_attn_forward.4} parent=1 // pred_check
      %p85 = pneg %p44
    $region23: #{rel_attn_forward.4} parent=1 // pred_check_branch
      %87 = sbr.rel (%p85) target = $region25
    $region24: #{rel_attn_forward.4} parent=1 // pred_region
      %v88 = vld [vmem:[#allocation2] sm:$0xff]
      %v89 = vld [vmem:[#allocation2 + $0x8] sm:$0xff]
      %90 = vst.msk [vmem:[%s2] sm:$0xff] %vm82, %v88
      %91 = vst.msk [vmem:[%s2 + $0x8] sm:$0xff] %vm82, %v89
    $region25: #{rel_attn_forward.4} parent=1 // pred_fallthru
      _
    // Predicated region
    $region26: #{rel_attn_forward.4} parent=1 // pred_check
      _
    $region27: #{rel_attn_forward.4} parent=1 // pred_check_branch
      %93 = sbr.rel (0) target = $region29
    $region28: #{rel_attn_forward.4} parent=1 // pred_region
      _
    $region29: #{rel_attn_forward.4} parent=1 // pred_fallthru
      _
    // Predicated region
    $region30: #{rel_attn_forward.4} parent=1 // pred_check
      _
    $region31: #{rel_attn_forward.4} parent=1 // pred_check_branch
      %95 = sbr.rel (0) target = $region33
    $region32: #{rel_attn_forward.4} parent=1 // pred_region
      _
    $region33: #{rel_attn_forward.4} parent=1 // pred_fallthru
      _
    %96 = vsyncpa [#allocation4], 1
    %97 = vsyncpa [#allocation6], 1

// kernel: rel_attn_forward.5
$region0: #{rel_attn_forward.5}
  #allocation0 [shape = 'u32[]', space=smem, size = 0x4, offset = 0x4, fixed_abs, tag = 'smem constant byte address 0x4 - core index']
  #allocation1 [shape = 'u32[72,128]{1,0:T(1,128)}', space=vmem, size = 0x9000, scoped, tag = 'internal scratch']
  #allocation2 [shape = 'f32[8,32]{1,0:T(8,128)}', space=vmem, size = 0x1000, scoped, tag = 'scratch operand']
  %s0 = inlined_call_operand.vmem [shape: f32[8,32], index: 0, kind: input, shape index: {}]
  %s1 = inlined_call_operand.vmem [shape: f32[32,32], index: 1, kind: input, shape index: {}]
  %s2 = inlined_call_operand.vmem [shape: f32[8,32], index: 2, kind: output, shape index: {}]
  %s3 = sld [smem:[#allocation0]]
  $region26: #{rel_attn_forward.5} parent=0
    _
  %s5 = ssub.s32 1, %s3
  %s6 = scalar_select 0, %s5, %s3
  // Predicated region
  $region2: #{rel_attn_forward.5} parent=0 // pred_check
    _
  $region3: #{rel_attn_forward.5} parent=0 // pred_check_branch
    %8 = sbr.rel (0) target = $region5
  $region4: #{rel_attn_forward.5} parent=0 // pred_region
    _
  $region5: #{rel_attn_forward.5} parent=0 // pred_fallthru
    _
  // Predicated region
  $region6: #{rel_attn_forward.5} parent=0 // pred_check
    _
  $region7: #{rel_attn_forward.5} parent=0 // pred_check_branch
    %10 = sbr.rel (0) target = $region9
  $region8: #{rel_attn_forward.5} parent=0 // pred_region
    _
  $region9: #{rel_attn_forward.5} parent=0 // pred_fallthru
    _
  %p12 = scmp.eq.s32.totalorder 0, 0
  // Predicated region
  $region10: #{rel_attn_forward.5} parent=0 // pred_check
    %p13 = pneg %p12
  $region11: #{rel_attn_forward.5} parent=0 // pred_check_branch
    %15 = sbr.rel (%p13) target = $region13
  $region12: #{rel_attn_forward.5} parent=0 // pred_region
    %vm16 = vcmask 261120
    %17 = vst.msk [vmem:[#allocation2] sm:$0xff] %vm16, 0.0
  $region13: #{rel_attn_forward.5} parent=0 // pred_fallthru
    _
  %v18 = vld [vmem:[#allocation2] sm:$0xff]
  %v19 = vld [vmem:[%s0] sm:$0xff]
  %v20 = vpack.c.bf16 %v19, %v19
  %v21 = vld [vmem:[%s1] sm:$0xff]
  %v22 = vld [vmem:[%s1 + $0x8] sm:$0xff]
  %v23 = vld [vmem:[%s1 + $0x10] sm:$0xff]
  %v24 = vld [vmem:[%s1 + $0x18] sm:$0xff]
  %v25 = vpack.c.bf16 %v22, %v21
  %v26 = vpack.c.bf16 %v24, %v23
  %vm27 = vcmask 261120
  %v29 = vsel %vm27, %v20, 0
  %31 = vmatpush.bf16.msra.mxu0 0
  %32 = vmatpush.bf16.msra.mxu0 0
  %33 = vmatpush.bf16.msra.mxu0 0
  %34 = vmatpush.bf16.msra.mxu0 0
  %35 = vmatpush.bf16.msra.mxu0 0
  %36 = vmatpush.bf16.msra.mxu0 0
  %37 = vmatpush.bf16.msra.mxu0 %v26
  %38 = vmatpush.bf16.msra.mxu0 %v25
  %39 = vmatmul.bf16.gmra.mxu0 %v29
  %v40 = vpop.f32.mrf.mxu0
  %v41 = vadd.f32 0.0, %v40
  %v42 = vpop.f32.mrf.mxu0
  %43 = vdwg.mxu0
  %v44 = vadd.f32 %v18, %v41
  %45 = vst.msk [vmem:[#allocation2] sm:$0xff] %vm27, %v44
  // Predicated region
  $region14: #{rel_attn_forward.5} parent=0 // pred_check
    %p46 = pneg %p12
  $region15: #{rel_attn_forward.5} parent=0 // pred_check_branch
    %48 = sbr.rel (%p46) target = $region17
  $region16: #{rel_attn_forward.5} parent=0 // pred_region
    %v49 = vld [vmem:[#allocation2] sm:$0xff]
    %50 = vst.msk [vmem:[%s2] sm:$0xff] %vm27, %v49
  $region17: #{rel_attn_forward.5} parent=0 // pred_fallthru
    _
  // Predicated region
  $region18: #{rel_attn_forward.5} parent=0 // pred_check
    _
  $region19: #{rel_attn_forward.5} parent=0 // pred_check_branch
    %52 = sbr.rel (0) target = $region21
  $region20: #{rel_attn_forward.5} parent=0 // pred_region
    _
  $region21: #{rel_attn_forward.5} parent=0 // pred_fallthru
    _
  // Predicated region
  $region22: #{rel_attn_forward.5} parent=0 // pred_check
    _
  $region23: #{rel_attn_forward.5} parent=0 // pred_check_branch
    %54 = sbr.rel (0) target = $region25
  $region24: #{rel_attn_forward.5} parent=0 // pred_region
    _
  $region25: #{rel_attn_forward.5} parent=0 // pred_fallthru
    _

// kernel: rel_attn_forward.7
$region0: #{rel_attn_forward.7}
  #allocation0 [shape = 'u32[]', space=smem, size = 0x4, offset = 0x4, fixed_abs, tag = 'smem constant byte address 0x4 - core index']
  #allocation1 [shape = 'u32[72,128]{1,0:T(1,128)}', space=vmem, size = 0x9000, scoped, tag = 'internal scratch']
  %s0 = inlined_call_operand.vmem [shape: f32[16,32], index: 0, kind: input, shape index: {}]
  %s1 = inlined_call_operand.vmem [shape: f32[16,32], index: 1, kind: input, shape index: {}]
  %s2 = inlined_call_operand.vmem [shape: f32[32,32], index: 2, kind: input, shape index: {}]
  %s3 = inlined_call_operand.vmem [shape: f32[1,32], index: 3, kind: input, shape index: {}]
  %s4 = inlined_call_operand.vmem [shape: f32[1,32], index: 4, kind: input, shape index: {}]
  %s5 = inlined_call_operand.hbm [shape: f32[16,32], index: 5, kind: output, shape index: {}]
  %s6 = sld [smem:[#allocation0]]
  $region30: #{rel_attn_forward.7} parent=0
    _
  %s8 = ssub.s32 1, %s6
  %s9 = scalar_select 0, %s8, %s6
  $region1: #{rel_attn_forward.7} parent=0
    #allocation2 [shape = 'u8[8192]{0}', space=vmem, size = 0x2000, scoped, tag = 'output window, operand 0, single buffered']
    #allocation3 [shape = 's32[1]{0}', space=sflag, size = 0x4, scoped, tag = 'scoped memory for rel_attn_forward.7']
    %10 = vsyncpa [#allocation3], 0
    // Predicated region
    $region2: #{rel_attn_forward.7} parent=1 // pred_check
      _
    $region3: #{rel_attn_forward.7} parent=1 // pred_check_branch
      %12 = sbr.rel (0) target = $region5
    $region4: #{rel_attn_forward.7} parent=1 // pred_region
      _
    $region5: #{rel_attn_forward.7} parent=1 // pred_fallthru
      _
    // Predicated region
    $region6: #{rel_attn_forward.7} parent=1 // pred_check
      _
    $region7: #{rel_attn_forward.7} parent=1 // pred_check_branch
      %14 = sbr.rel (0) target = $region9
    $region8: #{rel_attn_forward.7} parent=1 // pred_region
      _
    $region9: #{rel_attn_forward.7} parent=1 // pred_fallthru
      _
    // Predicated region
    $region10: #{rel_attn_forward.7} parent=1 // pred_check
      _
    $region11: #{rel_attn_forward.7} parent=1 // pred_check_branch
      %16 = sbr.rel (0) target = $region13
    $region12: #{rel_attn_forward.7} parent=1 // pred_region
      _
    $region13: #{rel_attn_forward.7} parent=1 // pred_fallthru
      _
    // Predicated region
    $region14: #{rel_attn_forward.7} parent=1 // pred_check
      _
    $region15: #{rel_attn_forward.7} parent=1 // pred_check_branch
      %18 = sbr.rel (0) target = $region17
    $region16: #{rel_attn_forward.7} parent=1 // pred_region
      _
    $region17: #{rel_attn_forward.7} parent=1 // pred_fallthru
      _
    // Predicated region
    $region18: #{rel_attn_forward.7} parent=1 // pred_check
      _
    $region19: #{rel_attn_forward.7} parent=1 // pred_check_branch
      %20 = sbr.rel (0) target = $region21
    $region20: #{rel_attn_forward.7} parent=1 // pred_region
      _
    $region21: #{rel_attn_forward.7} parent=1 // pred_fallthru
      _
    %v22 = vld [vmem:[%s0] sm:$0xff]
    %v23 = vld [vmem:[%s0 + $0x8] sm:$0xff]
    %v24 = vpack.c.bf16 %v23, %v22
    %v25 = vld [vmem:[%s2] sm:$0xff]
    %v26 = vld [vmem:[%s2 + $0x8] sm:$0xff]
    %v27 = vld [vmem:[%s2 + $0x10] sm:$0xff]
    %v28 = vld [vmem:[%s2 + $0x18] sm:$0xff]
    %v29 = vpack.c.bf16 %v26, %v25
    %v30 = vpack.c.bf16 %v28, %v27
    %vm31 = vcmask 261120
    %v33 = vsel %vm31, %v24, 0
    %35 = vmatpush.bf16.msra.mxu0 0
    %36 = vmatpush.bf16.msra.mxu0 0
    %37 = vmatpush.bf16.msra.mxu0 0
    %38 = vmatpush.bf16.msra.mxu0 0
    %39 = vmatpush.bf16.msra.mxu0 0
    %40 = vmatpush.bf16.msra.mxu0 0
    %41 = vmatpush.bf16.msra.mxu0 %v30
    %42 = vmatpush.bf16.msra.mxu0 %v29
    %43 = vmatmul.bf16.gmra.mxu0 %v33
    %v44 = vpop.f32.mrf.mxu0
    %v45 = vadd.f32 0.0, %v44
    %v46 = vpop.f32.mrf.mxu0
    %v47 = vadd.f32 0.0, %v46
    %48 = vdwg.mxu0
    %v49 = vld [vmem:[%s1] sm:$0xff]
    %v50 = vld [vmem:[%s1 + $0x8] sm:$0xff]
    %v51 = vadd.f32 %v49, %v45
    %v52 = vadd.f32 %v50, %v47
    %v53 = vsel %vm31, %v51, 0.0
    %54 = vadd.xlane.f32.xlu0 %v53
    %v55 = vpop.xlane.xlu0 %54
    %v56 = vsel %vm31, %v52, 0.0
    %57 = vadd.xlane.f32.xlu0 %v56
    %v58 = vpop.xlane.xlu0 %57
    %v59 = vrcp.pop 32.0
    %v60 = vmul.f32 32.0, %v59
    %v61 = vsub.f32 1.0, %v60
    %v62 = vmul.f32 %v59, %v61
    %v63 = vadd.f32 %v59, %v62
    %vm64 = vweird.f32 %v59
    %v65 = vsel %vm64, %v59, %v63
    %v66 = vmul.f32 %v55, %v65
    %v67 = vmul.f32 %v58, %v65
    %v68 = vsub.f32 %v51, %v66
    %v69 = vsub.f32 %v52, %v67
    %v70 = vmul.f32 %v68, %v68
    %v71 = vmul.f32 %v69, %v69
    %v72 = vsel %vm31, %v70, 0.0
    %73 = vadd.xlane.f32.xlu0 %v72
    %v74 = vpop.xlane.xlu0 %73
    %v75 = vsel %vm31, %v71, 0.0
    %76 = vadd.xlane.f32.xlu0 %v75
    %v77 = vpop.xlane.xlu0 %76
    %v78 = vmul.f32 %v74, %v65
    %v79 = vmul.f32 %v77, %v65
    %v80 = vadd.f32 %v78, 1e-05
    %v81 = vadd.f32 %v79, 1e-05
    %v82 = vrsqrt.pop %v80
    %v83 = vmul.f32 %v82, %v80
    %v84 = vmul.f32 %v83, %v82
    %v85 = vmul.f32 0.5, %v84
    %v86 = vsub.f32 1.5, %v85
    %v87 = vmul.f32 %v82, %v86
    %vm88 = vweird.f32 %v80
    %vm89 = vweird.f32 %v82
    %vm90 = vmor %vm88, %vm89
    %v91 = vsel %vm90, %v82, %v87
    %v92 = vrsqrt.pop %v81
    %v93 = vmul.f32 %v92, %v81
    %v94 = vmul.f32 %v93, %v92
    %v95 = vmul.f32 0.5, %v94
    %v96 = vsub.f32 1.5, %v95
    %v97 = vmul.f32 %v92, %v96
    %vm98 = vweird.f32 %v81
    %vm99 = vweird.f32 %v92
    %vm100 = vmor %vm98, %vm99
    %v101 = vsel %vm100, %v92, %v97
    %v102 = vmul.f32 %v68, %v91
    %v103 = vmul.f32 %v69, %v101
    %v104 = vld [vmem:[%s3] sm:$0x1]
    %v106 = vperm.slane %v104, 0
    %v108 = vmul.f32 %v102, %v106
    %v109 = vmul.f32 %v103, %v106
    %v110 = vld [vmem:[%s4] sm:$0x1]
    %v112 = vperm.slane %v110, 0
    %v114 = vadd.f32 %v108, %v112
    %v115 = vadd.f32 %v109, %v112
    %116 = vst.msk [vmem:[#allocation2] sm:$0xff] %vm31, %v114
    %117 = vst.msk [vmem:[#allocation2 + $0x8] sm:$0xff] %vm31, %v115
    // Predicated region
    $region22: #{rel_attn_forward.7} parent=1 // pred_check
      _
    $region23: #{rel_attn_forward.7} parent=1 // pred_check_branch
      %119 = sbr.rel (0) target = $region25
    $region24: #{rel_attn_forward.7} parent=1 // pred_region
      %121 = vsyncadd [#allocation3], 0
      %s122 = sshll.u32 [#allocation2], 4
      %s123 = int_to_ptr.vmem [resolvable:$true] %s122
      %s124 = sshll.u32 %s5, 4
      %s125 = int_to_ptr.hbm [resolvable:$true] %s124
      %130 = dma.vmem_to_hbm [thread:$0]  %s123, 256, %s125, [#allocation3], 128, 128, 8
    $region25: #{rel_attn_forward.7} parent=1 // pred_fallthru
      _
    // Predicated region
    $region26: #{rel_attn_forward.7} parent=1 // pred_check
      _
    $region27: #{rel_attn_forward.7} parent=1 // pred_check_branch
      %132 = sbr.rel (0) target = $region29
    $region28: #{rel_attn_forward.7} parent=1 // pred_region
      %134 = dma.done [#allocation3], 256
    $region29: #{rel_attn_forward.7} parent=1 // pred_fallthru
      _
    %135 = vsyncpa [#allocation3], 1

// kernel: rel_attn_forward.6
$region0: #{rel_attn_forward.6}
  #allocation0 [shape = 'u32[]', space=smem, size = 0x4, offset = 0x4, fixed_abs, tag = 'smem constant byte address 0x4 - core index']
  #allocation1 [shape = 'u32[72,128]{1,0:T(1,128)}', space=vmem, size = 0x9000, scoped, tag = 'internal scratch']
  #allocation2 [shape = 'f32[4,8,17]{2,1,0:T(8,128)}', space=vmem, size = 0x4000, scoped, tag = 'scratch operand']
  #allocation3 [shape = 'f32[4,8,8]{2,1,0:T(8,128)}', space=vmem, size = 0x4000, scoped, tag = 'scratch operand']
  %s0 = inlined_call_operand.vmem [shape: f32[2,4,8,8], index: 0, kind: input, shape index: {}]
  %s1 = inlined_call_operand.vmem [shape: f32[2,4,8,8], index: 1, kind: input, shape index: {}]
  %s2 = inlined_call_operand.vmem [shape: f32[2,4,8,8], index: 2, kind: input, shape index: {}]
  %s3 = inlined_call_operand.vmem [shape: f32[4,8,8], index: 3, kind: input, shape index: {}]
  %s4 = inlined_call_operand.vmem [shape: f32[4,8], index: 4, kind: input, shape index: {}]
  %s5 = inlined_call_operand.vmem [shape: f32[4,8], index: 5, kind: input, shape index: {}]
  %s6 = inlined_call_operand.vmem [shape: f32[2,4,8,8], index: 6, kind: output, shape index: {}]
  %s7 = sld [smem:[#allocation0]]
  $region57: #{rel_attn_forward.6} parent=0
    _
  %s9 = ssub.s32 1, %s7
  %s10 = scalar_select 0, %s9, %s7
  loop: start=0, step=1, limit=4
  $region2: #{rel_attn_forward.6} parent=0 // loop_pre_header
    _
  $region3: #{rel_attn_forward.6} parent=0 // loop_header
    %s12 = sphi 0, %s16
    %p13 = scmp.ge.s32.totalorder %s12, 4
    %s19 = sphi 0, %s31
    %s20 = sphi 0, %s27
    %s21 = sphi 0, %s19
    %s22 = sphi 0, %s20
    %s23 = sphi 0, %s21
    %s24 = sphi 0, %s22
    %s36 = sphi 0, %s38
    %s39 = sphi 0, %s36
    %s40 = sphi 0, %s39
    %s56 = sphi 0, %s40
    %s64 = sphi 0, %s66
    %s67 = sphi 0, %s64
    %s68 = sphi 0, %s67
    %s84 = sphi 0, %s68
    %s92 = sphi 0, %s94
    %s95 = sphi 0, %s92
    %s96 = sphi 0, %s95
    %s112 = sphi 0, %s96
    %s118 = sphi 0, %s120
    %s121 = sphi 0, %s118
    %s122 = sphi 0, %s121
    %s138 = sphi 0, %s122
    %s144 = sphi 0, %s146
    %s147 = sphi 0, %s144
    %s148 = sphi 0, %s147
    %s164 = sphi 0, %s148
    %s170 = sphi 0, %s172
    %s173 = sphi 0, %s170
    %s174 = sphi 0, %s173
    %s190 = sphi 0, %s174
    %s198 = sphi 0, %s200
    %s201 = sphi 0, %s198
    %s202 = sphi 0, %s201
    %s218 = sphi 0, %s202
  $region4: #{rel_attn_forward.6} parent=0 // loop_header_branch
    %15 = sbr.rel (%p13) target = $region8
  $region5: #{rel_attn_forward.6} parent=0 // loop_body
    %s17 = ssub.s32 %s12, 1
    %s18 = ssub.s32 %s12, 2
    %s25 = sadd.s32 1, %s20
    %p26 = scmp.ge.s32.totalorder %s25, 2
    %s27 = scalar_select %p26, 0, %s25
    %s28 = sadd.s32 1, %s19
    %s29 = scalar_select %p26, %s28, %s19
    %p30 = scmp.ge.s32.totalorder %s29, 1
    %s31 = scalar_select %p30, 0, %s29
    %s32 = ssub.s32 %s20, %s27
    %s33 = ssub.s32 %s19, %s31
    %s34 = sor.u32 %s32, %s33
    %p35 = scmp.eq.s32.totalorder %s34, 0
    %s37 = sadd.s32 %s36, 1
    %s38 = scalar_select %p35, %s36, %s37
    %p41 = pneg %p35
    %p42 = scmp.eq.s32.totalorder %s12, 1
    %p43 = por %p41, %p42
    %p44 = scmp.ne.s32.totalorder %s36, %s39
    %p45 = scmp.eq.s32.totalorder %s12, 0
    %p46 = por %p44, %p45
    %p47 = scmp.ne.s32.totalorder %s36, %s39
    %p48 = scmp.eq.s32.totalorder %s17, 1
    %p49 = por %p47, %p48
    %p50 = scmp.ne.s32.totalorder %s39, %s40
    %p51 = scmp.eq.s32.totalorder %s17, 0
    %p52 = por %p50, %p51
    %p53 = scmp.ne.s32.totalorder %s39, %s40
    %p54 = scmp.eq.s32.totalorder %s18, 1
    %p55 = por %p53, %p54
    %p57 = scmp.ne.s32.totalorder %s40, %s56
    %p58 = scmp.eq.s32.totalorder %s18, 0
    %p59 = por %p57, %p58
    %s60 = ssub.s32 %s20, %s27
    %s61 = ssub.s32 %s19, %s31
    %s62 = sor.u32 %s60, %s61
    %p63 = scmp.eq.s32.totalorder %s62, 0
    %s65 = sadd.s32 %s64, 1
    %s66 = scalar_select %p63, %s64, %s65
    %p69 = pneg %p63
    %p70 = scmp.eq.s32.totalorder %s12, 1
    %p71 = por %p69, %p70
    %p72 = scmp.ne.s32.totalorder %s64, %s67
    %p73 = scmp.eq.s32.totalorder %s12, 0
    %p74 = por %p72, %p73
    %p75 = scmp.ne.s32.totalorder %s64, %s67
    %p76 = scmp.eq.s32.totalorder %s17, 1
    %p77 = por %p75, %p76
    %p78 = scmp.ne.s32.totalorder %s67, %s68
    %p79 = scmp.eq.s32.totalorder %s17, 0
    %p80 = por %p78, %p79
    %p81 = scmp.ne.s32.totalorder %s67, %s68
    %p82 = scmp.eq.s32.totalorder %s18, 1
    %p83 = por %p81, %p82
    %p85 = scmp.ne.s32.totalorder %s68, %s84
    %p86 = scmp.eq.s32.totalorder %s18, 0
    %p87 = por %p85, %p86
    %s88 = ssub.s32 %s20, %s27
    %s89 = ssub.s32 %s19, %s31
    %s90 = sor.u32 %s88, %s89
    %p91 = scmp.eq.s32.totalorder %s90, 0
    %s93 = sadd.s32 %s92, 1
    %s94 = scalar_select %p91, %s92, %s93
    %p97 = pneg %p91
    %p98 = scmp.eq.s32.totalorder %s12, 1
    %p99 = por %p97, %p98
    %p100 = scmp.ne.s32.totalorder %s92, %s95
    %p101 = scmp.eq.s32.totalorder %s12, 0
    %p102 = por %p100, %p101
    %p103 = scmp.ne.s32.totalorder %s92, %s95
    %p104 = scmp.eq.s32.totalorder %s17, 1
    %p105 = por %p103, %p104
    %p106 = scmp.ne.s32.totalorder %s95, %s96
    %p107 = scmp.eq.s32.totalorder %s17, 0
    %p108 = por %p106, %p107
    %p109 = scmp.ne.s32.totalorder %s95, %s96
    %p110 = scmp.eq.s32.totalorder %s18, 1
    %p111 = por %p109, %p110
    %p113 = scmp.ne.s32.totalorder %s96, %s112
    %p114 = scmp.eq.s32.totalorder %s18, 0
    %p115 = por %p113, %p114
    %s116 = ssub.s32 %s19, %s31
    %p117 = scmp.eq.s32.totalorder %s116, 0
    %s119 = sadd.s32 %s118, 1
    %s120 = scalar_select %p117, %s118, %s119
    %p123 = pneg %p117
    %p124 = scmp.eq.s32.totalorder %s12, 1
    %p125 = por %p123, %p124
    %p126 = scmp.ne.s32.totalorder %s118, %s121
    %p127 = scmp.eq.s32.totalorder %s12, 0
    %p128 = por %p126, %p127
    %p129 = scmp.ne.s32.totalorder %s118, %s121
    %p130 = scmp.eq.s32.totalorder %s17, 1
    %p131 = por %p129, %p130
    %p132 = scmp.ne.s32.totalorder %s121, %s122
    %p133 = scmp.eq.s32.totalorder %s17, 0
    %p134 = por %p132, %p133
    %p135 = scmp.ne.s32.totalorder %s121, %s122
    %p136 = scmp.eq.s32.totalorder %s18, 1
    %p137 = por %p135, %p136
    %p139 = scmp.ne.s32.totalorder %s122, %s138
    %p140 = scmp.eq.s32.totalorder %s18, 0
    %p141 = por %p139, %p140
    %s142 = ssub.s32 %s19, %s31
    %p143 = scmp.eq.s32.totalorder %s142, 0
    %s145 = sadd.s32 %s144, 1
    %s146 = scalar_select %p143, %s144, %s145
    %p149 = pneg %p143
    %p150 = scmp.eq.s32.totalorder %s12, 1
    %p151 = por %p149, %p150
    %p152 = scmp.ne.s32.totalorder %s144, %s147
    %p153 = scmp.eq.s32.totalorder %s12, 0
    %p154 = por %p152, %p153
    %p155 = scmp.ne.s32.totalorder %s144, %s147
    %p156 = scmp.eq.s32.totalorder %s17, 1
    %p157 = por %p155, %p156
    %p158 = scmp.ne.s32.totalorder %s147, %s148
    %p159 = scmp.eq.s32.totalorder %s17, 0
    %p160 = por %p158, %p159
    %p161 = scmp.ne.s32.totalorder %s147, %s148
    %p162 = scmp.eq.s32.totalorder %s18, 1
    %p163 = por %p161, %p162
    %p165 = scmp.ne.s32.totalorder %s148, %s164
    %p166 = scmp.eq.s32.totalorder %s18, 0
    %p167 = por %p165, %p166
    %s168 = ssub.s32 %s19, %s31
    %p169 = scmp.eq.s32.totalorder %s168, 0
    %s171 = sadd.s32 %s170, 1
    %s172 = scalar_select %p169, %s170, %s171
    %p175 = pneg %p169
    %p176 = scmp.eq.s32.totalorder %s12, 1
    %p177 = por %p175, %p176
    %p178 = scmp.ne.s32.totalorder %s170, %s173
    %p179 = scmp.eq.s32.totalorder %s12, 0
    %p180 = por %p178, %p179
    %p181 = scmp.ne.s32.totalorder %s170, %s173
    %p182 = scmp.eq.s32.totalorder %s17, 1
    %p183 = por %p181, %p182
    %p184 = scmp.ne.s32.totalorder %s173, %s174
    %p185 = scmp.eq.s32.totalorder %s17, 0
    %p186 = por %p184, %p185
    %p187 = scmp.ne.s32.totalorder %s173, %s174
    %p188 = scmp.eq.s32.totalorder %s18, 1
    %p189 = por %p187, %p188
    %p191 = scmp.ne.s32.totalorder %s174, %s190
    %p192 = scmp.eq.s32.totalorder %s18, 0
    %p193 = por %p191, %p192
    %s194 = ssub.s32 %s20, %s27
    %s195 = ssub.s32 %s19, %s31
    %s196 = sor.u32 %s194, %s195
    %p197 = scmp.eq.s32.totalorder %s196, 0
    %s199 = sadd.s32 %s198, 1
    %s200 = scalar_select %p197, %s198, %s199
    %p203 = pneg %p197
    %p204 = scmp.eq.s32.totalorder %s12, 1
    %p205 = por %p203, %p204
    %p206 = scmp.ne.s32.totalorder %s198, %s201
    %p207 = scmp.eq.s32.totalorder %s12, 0
    %p208 = por %p206, %p207
    %p209 = scmp.ne.s32.totalorder %s198, %s201
    %p210 = scmp.eq.s32.totalorder %s17, 1
    %p211 = por %p209, %p210
    %p212 = scmp.ne.s32.totalorder %s201, %s202
    %p213 = scmp.eq.s32.totalorder %s17, 0
    %p214 = por %p212, %p213
    %p215 = scmp.ne.s32.totalorder %s201, %s202
    %p216 = scmp.eq.s32.totalorder %s18, 1
    %p217 = por %p215, %p216
    %p219 = scmp.ne.s32.totalorder %s202, %s218
    %p220 = scmp.eq.s32.totalorder %s18, 0
    %p221 = por %p219, %p220
    %p222 = scmp.le.s32.totalorder 1, %s12
    %p223 = scmp.lt.s32.totalorder %s12, 3
    %p224 = pnand %p222, %p223
    %p225 = pneg %p224
    // Predicated region
    $region9: #{rel_attn_forward.6} parent=5 // pred_check
      _
    $region10: #{rel_attn_forward.6} parent=5 // pred_check_branch
      %227 = sbr.rel (%p224) target = $region12
    $region11: #{rel_attn_forward.6} parent=5 // pred_region
      %s228 = ssub.s32 %s12, 1
      // Predicated region
      $region13: #{rel_attn_forward.6} parent=11 // pred_check
        %p229 = pneg %p134
      $region14: #{rel_attn_forward.6} parent=11 // pred_check_branch
        %231 = sbr.rel (%p229) target = $region16
      $region15: #{rel_attn_forward.6} parent=11 // pred_region
        %s232 = smul.u32 4, %s21
        %p233 = scmp.lt.s32.totalorder %s232, 3
        %s234 = scalar_select %p233, %s232, 3
        %s235 = smul.addr %s234, 8
        %s236 = scalar_lea.vmem %s3, %s235
        %s237 = smul.u32 4, %s21
      $region16: #{rel_attn_forward.6} parent=11 // pred_fallthru
        _
      // Predicated region
      $region17: #{rel_attn_forward.6} parent=11 // pred_check
        %p238 = pneg %p160
      $region18: #{rel_attn_forward.6} parent=11 // pred_check_branch
        %240 = sbr.rel (%p238) target = $region20
      $region19: #{rel_attn_forward.6} parent=11 // pred_region
        %p241 = scmp.lt.s32.totalorder %s21, 0
        %s242 = scalar_select %p241, %s21, 0
        %s243 = smul.addr %s242, 4
        %s244 = scalar_lea.vmem %s4, %s243
      $region20: #{rel_attn_forward.6} parent=11 // pred_fallthru
        _
      // Predicated region
      $region21: #{rel_attn_forward.6} parent=11 // pred_check
        %p245 = pneg %p186
      $region22: #{rel_attn_forward.6} parent=11 // pred_check_branch
        %247 = sbr.rel (%p245) target = $region24
      $region23: #{rel_attn_forward.6} parent=11 // pred_region
        %p248 = scmp.lt.s32.totalorder %s21, 0
        %s249 = scalar_select %p248, %s21, 0
        %s250 = smul.addr %s249, 4
        %s251 = scalar_lea.vmem %s5, %s250
      $region24: #{rel_attn_forward.6} parent=11 // pred_fallthru
        _
    $region12: #{rel_attn_forward.6} parent=5 // pred_fallthru
      _
    %p252 = scmp.lt.s32.totalorder %s12, 2
    // Predicated region
    $region25: #{rel_attn_forward.6} parent=5 // pred_check
      %p253 = pneg %p252
    $region26: #{rel_attn_forward.6} parent=5 // pred_check_branch
      %255 = sbr.rel (%p253) target = $region28
    $region27: #{rel_attn_forward.6} parent=5 // pred_region
      // Predicated region
      $region29: #{rel_attn_forward.6} parent=27 // pred_check
        %p256 = pneg %p46
      $region30: #{rel_attn_forward.6} parent=27 // pred_check_branch
        %258 = sbr.rel (%p256) target = $region32
      $region31: #{rel_attn_forward.6} parent=27 // pred_region
        %s259 = smul.u32 4, %s19
        %p260 = scmp.lt.s32.totalorder %s20, 1
        %s261 = scalar_select %p260, %s20, 1
        %p262 = scmp.lt.s32.totalorder %s259, 3
        %s263 = scalar_select %p262, %s259, 3
        %s264 = smul.addr %s261, 4
        %s265 = sadd.s32 %s263, %s264
        %s266 = smul.addr %s265, 8
        %s267 = scalar_lea.vmem %s0, %s266
        %s268 = smul.u32 4, %s19
      $region32: #{rel_attn_forward.6} parent=27 // pred_fallthru
        _
      // Predicated region
      $region33: #{rel_attn_forward.6} parent=27 // pred_check
        %p269 = pneg %p74
      $region34: #{rel_attn_forward.6} parent=27 // pred_check_branch
        %271 = sbr.rel (%p269) target = $region36
      $region35: #{rel_attn_forward.6} parent=27 // pred_region
        %s272 = smul.u32 4, %s19
        %p273 = scmp.lt.s32.totalorder %s20, 1
        %s274 = scalar_select %p273, %s20, 1
        %p275 = scmp.lt.s32.totalorder %s272, 3
        %s276 = scalar_select %p275, %s272, 3
        %s277 = smul.addr %s274, 4
        %s278 = sadd.s32 %s276, %s277
        %s279 = smul.addr %s278, 8
        %s280 = scalar_lea.vmem %s1, %s279
        %s281 = smul.u32 4, %s19
      $region36: #{rel_attn_forward.6} parent=27 // pred_fallthru
        _
      // Predicated region
      $region37: #{rel_attn_forward.6} parent=27 // pred_check
        %p282 = pneg %p102
      $region38: #{rel_attn_forward.6} parent=27 // pred_check_branch
        %284 = sbr.rel (%p282) target = $region40
      $region39: #{rel_attn_forward.6} parent=27 // pred_region
        %s285 = smul.u32 4, %s19
        %p286 = scmp.lt.s32.totalorder %s20, 1
        %s287 = scalar_select %p286, %s20, 1
        %p288 = scmp.lt.s32.totalorder %s285, 3
        %s289 = scalar_select %p288, %s285, 3
        %s290 = smul.addr %s287, 4
        %s291 = sadd.s32 %s289, %s290
        %s292 = smul.addr %s291, 8
        %s293 = scalar_lea.vmem %s2, %s292
        %s294 = smul.u32 4, %s19
      $region40: #{rel_attn_forward.6} parent=27 // pred_fallthru
        _
    $region28: #{rel_attn_forward.6} parent=5 // pred_fallthru
      _
    %p295 = scmp.le.s32.totalorder 1, %s12
    %p296 = scmp.lt.s32.totalorder %s12, 3
    %p297 = pnand %p295, %p296
    %p298 = pneg %p297
    // Predicated region
    $region41: #{rel_attn_forward.6} parent=5 // pred_check
      _
    $region42: #{rel_attn_forward.6} parent=5 // pred_check_branch
      %300 = sbr.rel (%p297) target = $region44
    $region43: #{rel_attn_forward.6} parent=5 // pred_region
      %s301 = ssub.s32 %s12, 1
      %s302 = smul.u32 4, %s21
      %p303 = scmp.lt.s32.totalorder %s22, 1
      %s304 = scalar_select %p303, %s22, 1
      %p305 = scmp.lt.s32.totalorder %s302, 3
      %s306 = scalar_select %p305, %s302, 3
      %s307 = smul.addr %s304, 4
      %s308 = sadd.s32 %s306, %s307
      %s309 = smul.addr %s308, 8
      %s310 = scalar_lea.vmem %s0, %s309
      %p311 = pneg %p52
      %p312 = pneg %p49
      %s313 = smul.u32 4, %s21
      %p314 = scmp.lt.s32.totalorder %s22, 1
      %s315 = scalar_select %p314, %s22, 1
      %p316 = scmp.lt.s32.totalorder %s313, 3
      %s317 = scalar_select %p316, %s313, 3
      %s318 = smul.addr %s315, 4
      %s319 = sadd.s32 %s317, %s318
      %s320 = smul.addr %s319, 8
      %s321 = scalar_lea.vmem %s1, %s320
      %p322 = pneg %p80
      %p323 = pneg %p77
      %s324 = smul.u32 4, %s21
      %p325 = scmp.lt.s32.totalorder %s22, 1
      %s326 = scalar_select %p325, %s22, 1
      %p327 = scmp.lt.s32.totalorder %s324, 3
      %s328 = scalar_select %p327, %s324, 3
      %s329 = smul.addr %s326, 4
      %s330 = sadd.s32 %s328, %s329
      %s331 = smul.addr %s330, 8
      %s332 = scalar_lea.vmem %s2, %s331
      %p333 = pneg %p108
      %p334 = pneg %p105
      %s335 = smul.u32 4, %s21
      %p336 = scmp.lt.s32.totalorder %s335, 3
      %s337 = scalar_select %p336, %s335, 3
      %s338 = smul.addr %s337, 8
      %s339 = scalar_lea.vmem %s3, %s338
      %p340 = pneg %p134
      %p341 = pneg %p131
      %p342 = scmp.lt.s32.totalorder %s21, 0
      %s343 = scalar_select %p342, %s21, 0
      %s344 = smul.addr %s343, 4
      %s345 = scalar_lea.vmem %s4, %s344
      %p346 = pneg %p160
      %p347 = pneg %p157
      %p348 = scmp.lt.s32.totalorder %s21, 0
      %s349 = scalar_select %p348, %s21, 0
      %s350 = smul.addr %s349, 4
      %s351 = scalar_lea.vmem %s5, %s350
      %p352 = pneg %p186
      %p353 = pneg %p183
      %p354 = pneg %p214
      %p355 = pneg %p211
      %s356 = smul.u32 4, %s21
      %p357 = scmp.lt.s32.totalorder %s22, 1
      %s358 = scalar_select %p357, %s22, 1
      %p359 = scmp.lt.s32.totalorder %s356, 3
      %s360 = scalar_select %p359, %s356, 3
      %s361 = smul.addr %s358, 4
      %s362 = sadd.s32 %s360, %s361
      %s363 = smul.addr %s362, 8
      %s364 = scalar_lea.vmem %s6, %s363
      %s365 = smul.u32 4, %s21
      %p366 = scmp.lt.s32.totalorder %s22, 1
      %s367 = scalar_select %p366, %s22, 1
      %p368 = scmp.lt.s32.totalorder %s365, 3
      %s369 = scalar_select %p368, %s365, 3
      %s370 = smul.addr %s367, 4
      %s371 = sadd.s32 %s369, %s370
      %s372 = smul.addr %s371, 8
      %s373 = scalar_lea.vmem %s0, %s372
      %s374 = smul.u32 4, %s21
      %s375 = smul.u32 4, %s21
      %p376 = scmp.lt.s32.totalorder %s22, 1
      %s377 = scalar_select %p376, %s22, 1
      %p378 = scmp.lt.s32.totalorder %s375, 3
      %s379 = scalar_select %p378, %s375, 3
      %s380 = smul.addr %s377, 4
      %s381 = sadd.s32 %s379, %s380
      %s382 = smul.addr %s381, 8
      %s383 = scalar_lea.vmem %s1, %s382
      %s384 = smul.u32 4, %s21
      %s385 = smul.u32 4, %s21
      %p386 = scmp.lt.s32.totalorder %s22, 1
      %s387 = scalar_select %p386, %s22, 1
      %p388 = scmp.lt.s32.totalorder %s385, 3
      %s389 = scalar_select %p388, %s385, 3
      %s390 = smul.addr %s387, 4
      %s391 = sadd.s32 %s389, %s390
      %s392 = smul.addr %s391, 8
      %s393 = scalar_lea.vmem %s2, %s392
      %s394 = smul.u32 4, %s21
      %s395 = smul.u32 4, %s21
      %p396 = scmp.lt.s32.totalorder %s395, 3
      %s397 = scalar_select %p396, %s395, 3
      %s398 = smul.addr %s397, 8
      %s399 = scalar_lea.vmem %s3, %s398
      %s400 = smul.u32 4, %s21
      %p401 = scmp.lt.s32.totalorder %s21, 0
      %s402 = scalar_select %p401, %s21, 0
      %s403 = smul.addr %s402, 4
      %s404 = scalar_lea.vmem %s4, %s403
      %p405 = scmp.lt.s32.totalorder %s21, 0
      %s406 = scalar_select %p405, %s21, 0
      %s407 = smul.addr %s406, 4
      %s408 = scalar_lea.vmem %s5, %s407
      %s409 = smul.u32 4, %s21
      %p410 = scmp.lt.s32.totalorder %s22, 1
      %s411 = scalar_select %p410, %s22, 1
      %p412 = scmp.lt.s32.totalorder %s409, 3
      %s413 = scalar_select %p412, %s409, 3
      %s414 = smul.addr %s411, 4
      %s415 = sadd.s32 %s413, %s414
      %s416 = smul.addr %s415, 8
      %s417 = scalar_lea.vmem %s6, %s416
      %s418 = smul.u32 4, %s21
      %v420 = vld [vmem:[%s373] sm:$0xff]
      %v421 = vld [vmem:[%s408] sm:$0x1]
      %v422 = vperm.slane %v421, 0
      %v423 = vadd.f32 %v420, %v422
      %v424 = vmul.f32 %v423, 0.35355338
      %v425 = vpack.c.bf16 %v424, %v424
      %v426 = vld [vmem:[%s399] sm:$0xff]
      %v427 = vpack.c.bf16 %v426, %v426
      %vm428 = vcmask 64512
      %v430 = vsel %vm428, %v425, 0
      %v433 = vsel %vm428, %v427, 0
      %435 = vmatpush.bf16.xpose.msra.mxu0 0
      %436 = vmatpush.bf16.xpose.msra.mxu0 0
      %437 = vmatpush.bf16.xpose.msra.mxu0 0
      %438 = vmatpush.bf16.xpose.msra.mxu0 0
      %439 = vmatpush.bf16.xpose.msra.mxu0 0
      %440 = vmatpush.bf16.xpose.msra.mxu0 0
      %441 = vmatpush.bf16.xpose.msra.mxu0 0
      %442 = vmatpush.bf16.xpose.msra.mxu0 %v433
      %443 = vmatmul.bf16.gmra.mxu0 %v430
      %v444 = vpop.f32.mrf.mxu0
      %v445 = vadd.f32 0.0, %v444
      %v446 = vpop.f32.mrf.mxu0
      %447 = vdwg.mxu0
      %448 = vst.msk [vmem:[#allocation2] sm:$0xff] %vm428, %v445
      %s449 = scalar_lea.vmem %s373, 8
      %v450 = vld [vmem:[%s449] sm:$0xff]
      %v451 = vld [vmem:[%s408 + $0x1] sm:$0x1]
      %v452 = vperm.slane %v451, 0
      %v453 = vadd.f32 %v450, %v452
      %v454 = vmul.f32 %v453, 0.35355338
      %v455 = vpack.c.bf16 %v454, %v454
      %s456 = scalar_lea.vmem %s399, 8
      %v457 = vld [vmem:[%s456] sm:$0xff]
      %v458 = vpack.c.bf16 %v457, %v457
      %v460 = vsel %vm428, %v455, 0
      %v463 = vsel %vm428, %v458, 0
      %465 = vmatpush.bf16.xpose.msra.mxu0 0
      %466 = vmatpush.bf16.xpose.msra.mxu0 0
      %467 = vmatpush.bf16.xpose.msra.mxu0 0
      %468 = vmatpush.bf16.xpose.msra.mxu0 0
      %469 = vmatpush.bf16.xpose.msra.mxu0 0
      %470 = vmatpush.bf16.xpose.msra.mxu0 0
      %471 = vmatpush.bf16.xpose.msra.mxu0 0
      %472 = vmatpush.bf16.xpose.msra.mxu0 %v463
      %473 = vmatmul.bf16.gmra.mxu0 %v460
      %v474 = vpop.f32.mrf.mxu0
      %v475 = vadd.f32 0.0, %v474
      %v476 = vpop.f32.mrf.mxu0
      %477 = vdwg.mxu0
      %s478 = scalar_lea.vmem [#allocation2], 8
      %479 = vst.msk [vmem:[%s478] sm:$0xff] %vm428, %v475
      %s480 = scalar_lea.vmem %s373, 16
      %v481 = vld [vmem:[%s480] sm:$0xff]
      %v482 = vld [vmem:[%s408 + $0x2] sm:$0x1]
      %v483 = vperm.slane %v482, 0
      %v484 = vadd.f32 %v481, %v483
      %v485 = vmul.f32 %v484, 0.35355338
      %v486 = vpack.c.bf16 %v485, %v485
      %s487 = scalar_lea.vmem %s399, 16
      %v488 = vld [vmem:[%s487] sm:$0xff]
      %v489 = vpack.c.bf16 %v488, %v488
      %v491 = vsel %vm428, %v486, 0
      %v494 = vsel %vm428, %v489, 0
      %496 = vmatpush.bf16.xpose.msra.mxu0 0
      %497 = vmatpush.bf16.xpose.msra.mxu0 0
      %498 = vmatpush.bf16.xpose.msra.mxu0 0
      %499 = vmatpush.bf16.xpose.msra.mxu0 0
      %500 = vmatpush.bf16.xpose.msra.mxu0 0
      %501 = vmatpush.bf16.xpose.msra.mxu0 0
      %502 = vmatpush.bf16.xpose.msra.mxu0 0
      %503 = vmatpush.bf16.xpose.msra.mxu0 %v494
      %504 = vmatmul.bf16.gmra.mxu0 %v491
      %v505 = vpop.f32.mrf.mxu0
      %v506 = vadd.f32 0.0, %v505
      %v507 = vpop.f32.mrf.mxu0
      %508 = vdwg.mxu0
      %s509 = scalar_lea.vmem [#allocation2], 16
      %510 = vst.msk [vmem:[%s509] sm:$0xff] %vm428, %v506
      %s511 = scalar_lea.vmem %s373, 24
      %v512 = vld [vmem:[%s511] sm:$0xff]
      %v513 = vld [vmem:[%s408 + $0x3] sm:$0x1]
      %v514 = vperm.slane %v513, 0
      %v515 = vadd.f32 %v512, %v514
      %v516 = vmul.f32 %v515, 0.35355338
      %v517 = vpack.c.bf16 %v516, %v516
      %s518 = scalar_lea.vmem %s399, 24
      %v519 = vld [vmem:[%s518] sm:$0xff]
      %v520 = vpack.c.bf16 %v519, %v519
      %v522 = vsel %vm428, %v517, 0
      %v525 = vsel %vm428, %v520, 0
      %527 = vmatpush.bf16.xpose.msra.mxu0 0
      %528 = vmatpush.bf16.xpose.msra.mxu0 0
      %529 = vmatpush.bf16.xpose.msra.mxu0 0
      %530 = vmatpush.bf16.xpose.msra.mxu0 0
      %531 = vmatpush.bf16.xpose.msra.mxu0 0
      %532 = vmatpush.bf16.xpose.msra.mxu0 0
      %533 = vmatpush.bf16.xpose.msra.mxu0 0
      %534 = vmatpush.bf16.xpose.msra.mxu0 %v525
      %535 = vmatmul.bf16.gmra.mxu0 %v522
      %v536 = vpop.f32.mrf.mxu0
      %v537 = vadd.f32 0.0, %v536
      %v538 = vpop.f32.mrf.mxu0
      %539 = vdwg.mxu0
      %s540 = scalar_lea.vmem [#allocation2], 24
      %541 = vst.msk [vmem:[%s540] sm:$0xff] %vm428, %v537
      %vm542 = vcmask 72768
      %543 = vst.msk [vmem:[#allocation2] sm:$0xff] %vm542, 0.0
      %544 = vst.msk [vmem:[#allocation2 + $0x8] sm:$0xff] %vm542, 0.0
      %545 = vst.msk [vmem:[#allocation2 + $0x10] sm:$0xff] %vm542, 0.0
      %546 = vst.msk [vmem:[#allocation2 + $0x18] sm:$0xff] %vm542, 0.0
      %vm547 = vcmask 131144
      %548 = vst.msk [vmem:[#allocation2 + $0x7] sm:$0x1] %vm547, 0.0
      %549 = vst.msk [vmem:[#allocation2 + $0xf] sm:$0x1] %vm547, 0.0
      %550 = vst.msk [vmem:[#allocation2 + $0x17] sm:$0x1] %vm547, 0.0
      %551 = vst.msk [vmem:[#allocation2 + $0x1f] sm:$0x1] %vm547, 0.0
      %v552 = vld [vmem:[#allocation2 + $0x1] sm:$0x7f]
      %v553 = vld [vmem:[#allocation2 + $0x9] sm:$0x7f]
      %v554 = vld [vmem:[#allocation2 + $0x11] sm:$0x7f]
      %v555 = vld [vmem:[#allocation2 + $0x19] sm:$0x7f]
      %560 = vrot.lane.b32.xlu0 %v552, 9
      %v561 = vpop.permute.xlu0 %560
      %562 = vrot.lane.b32.xlu0 %v553, 9
      %v563 = vpop.permute.xlu0 %562
      %564 = vrot.lane.b32.xlu0 %v554, 9
      %v565 = vpop.permute.xlu0 %564
      %566 = vrot.lane.b32.xlu0 %v555, 9
      %v567 = vpop.permute.xlu0 %566
      %vm572 = vcmask 137288
      %573 = vst.msk [vmem:[#allocation2] sm:$0x7f] %vm572, %v561
      %574 = vst.msk [vmem:[#allocation2 + $0x8] sm:$0x7f] %vm572, %v563
      %575 = vst.msk [vmem:[#allocation2 + $0x10] sm:$0x7f] %vm572, %v565
      %576 = vst.msk [vmem:[#allocation2 + $0x18] sm:$0x7f] %vm572, %v567
      %v577 = vld [vmem:[#allocation2] sm:$0x1]
      %v578 = vld [vmem:[#allocation2 + $0x8] sm:$0x1]
      %v579 = vld [vmem:[#allocation2 + $0x10] sm:$0x1]
      %v580 = vld [vmem:[#allocation2 + $0x18] sm:$0x1]
      %585 = vrot.lane.b32.xlu0 %v577, 121
      %v586 = vpop.permute.xlu0 %585
      %587 = vrot.lane.b32.xlu0 %v578, 121
      %v588 = vpop.permute.xlu0 %587
      %589 = vrot.lane.b32.xlu0 %v579, 121
      %v590 = vpop.permute.xlu0 %589
      %591 = vrot.lane.b32.xlu0 %v580, 121
      %v592 = vpop.permute.xlu0 %591
      %vm597 = vcmask 57344
      %598 = vst.msk [vmem:[#allocation3] sm:$0x1] %vm597, %v586
      %599 = vst.msk [vmem:[#allocation3 + $0x8] sm:$0x1] %vm597, %v588
      %600 = vst.msk [vmem:[#allocation3 + $0x10] sm:$0x1] %vm597, %v590
      %601 = vst.msk [vmem:[#allocation3 + $0x18] sm:$0x1] %vm597, %v592
      %v602 = vld [vmem:[#allocation2 + $0x1] sm:$0x1]
      %v603 = vld [vmem:[#allocation2 + $0x9] sm:$0x1]
      %v604 = vld [vmem:[#allocation2 + $0x11] sm:$0x1]
      %v605 = vld [vmem:[#allocation2 + $0x19] sm:$0x1]
      %610 = vrot.lane.b32.xlu0 %v602, 122
      %v611 = vpop.permute.xlu0 %610
      %612 = vrot.lane.b32.xlu0 %v603, 122
      %v613 = vpop.permute.xlu0 %612
      %614 = vrot.lane.b32.xlu0 %v604, 122
      %v615 = vpop.permute.xlu0 %614
      %616 = vrot.lane.b32.xlu0 %v605, 122
      %v617 = vpop.permute.xlu0 %616
      %622 = vst.msk [vmem:[#allocation3 + $0x1] sm:$0x1] %vm597, %v611
      %623 = vst.msk [vmem:[#allocation3 + $0x9] sm:$0x1] %vm597, %v613
      %624 = vst.msk [vmem:[#allocation3 + $0x11] sm:$0x1] %vm597, %v615
      %625 = vst.msk [vmem:[#allocation3 + $0x19] sm:$0x1] %vm597, %v617
      %v626 = vld [vmem:[#allocation2 + $0x2] sm:$0x1]
      %v627 = vld [vmem:[#allocation2 + $0xa] sm:$0x1]
      %v628 = vld [vmem:[#allocation2 + $0x12] sm:$0x1]
      %v629 = vld [vmem:[#allocation2 + $0x1a] sm:$0x1]
      %634 = vrot.lane.b32.xlu0 %v626, 123
      %v635 = vpop.permute.xlu0 %634
      %636 = vrot.lane.b32.xlu0 %v627, 123
      %v637 = vpop.permute.xlu0 %636
      %638 = vrot.lane.b32.xlu0 %v628, 123
      %v639 = vpop.permute.xlu0 %638
      %640 = vrot.lane.b32.xlu0 %v629, 123
      %v641 = vpop.permute.xlu0 %640
      %646 = vst.msk [vmem:[#allocation3 + $0x2] sm:$0x1] %vm597, %v635
      %647 = vst.msk [vmem:[#allocation3 + $0xa] sm:$0x1] %vm597, %v637
      %648 = vst.msk [vmem:[#allocation3 + $0x12] sm:$0x1] %vm597, %v639
      %649 = vst.msk [vmem:[#allocation3 + $0x1a] sm:$0x1] %vm597, %v641
      %v650 = vld [vmem:[#allocation2 + $0x3] sm:$0x1]
      %v651 = vld [vmem:[#allocation2 + $0xb] sm:$0x1]
      %v652 = vld [vmem:[#allocation2 + $0x13] sm:$0x1]
      %v653 = vld [vmem:[#allocation2 + $0x1b] sm:$0x1]
      %658 = vrot.lane.b32.xlu0 %v650, 124
      %v659 = vpop.permute.xlu0 %658
      %660 = vrot.lane.b32.xlu0 %v651, 124
      %v661 = vpop.permute.xlu0 %660
      %662 = vrot.lane.b32.xlu0 %v652, 124
      %v663 = vpop.permute.xlu0 %662
      %664 = vrot.lane.b32.xlu0 %v653, 124
      %v665 = vpop.permute.xlu0 %664
      %670 = vst.msk [vmem:[#allocation3 + $0x3] sm:$0x1] %vm597, %v659
      %671 = vst.msk [vmem:[#allocation3 + $0xb] sm:$0x1] %vm597, %v661
      %672 = vst.msk [vmem:[#allocation3 + $0x13] sm:$0x1] %vm597, %v663
      %673 = vst.msk [vmem:[#allocation3 + $0x1b] sm:$0x1] %vm597, %v665
      %v674 = vld [vmem:[#allocation2 + $0x4] sm:$0x1]
      %v675 = vld [vmem:[#allocation2 + $0xc] sm:$0x1]
      %v676 = vld [vmem:[#allocation2 + $0x14] sm:$0x1]
      %v677 = vld [vmem:[#allocation2 + $0x1c] sm:$0x1]
      %682 = vrot.lane.b32.xlu0 %v674, 125
      %v683 = vpop.permute.xlu0 %682
      %684 = vrot.lane.b32.xlu0 %v675, 125
      %v685 = vpop.permute.xlu0 %684
      %686 = vrot.lane.b32.xlu0 %v676, 125
      %v687 = vpop.permute.xlu0 %686
      %688 = vrot.lane.b32.xlu0 %v677, 125
      %v689 = vpop.permute.xlu0 %688
      %694 = vst.msk [vmem:[#allocation3 + $0x4] sm:$0x1] %vm597, %v683
      %695 = vst.msk [vmem:[#allocation3 + $0xc] sm:$0x1] %vm597, %v685
      %696 = vst.msk [vmem:[#allocation3 + $0x14] sm:$0x1] %vm597, %v687
      %697 = vst.msk [vmem:[#allocation3 + $0x1c] sm:$0x1] %vm597, %v689
      %v698 = vld [vmem:[#allocation2 + $0x5] sm:$0x1]
      %v699 = vld [vmem:[#allocation2 + $0xd] sm:$0x1]
      %v700 = vld [vmem:[#allocation2 + $0x15] sm:$0x1]
      %v701 = vld [vmem:[#allocation2 + $0x1d] sm:$0x1]
      %706 = vrot.lane.b32.xlu0 %v698, 126
      %v707 = vpop.permute.xlu0 %706
      %708 = vrot.lane.b32.xlu0 %v699, 126
      %v709 = vpop.permute.xlu0 %708
      %710 = vrot.lane.b32.xlu0 %v700, 126
      %v711 = vpop.permute.xlu0 %710
      %712 = vrot.lane.b32.xlu0 %v701, 126
      %v713 = vpop.permute.xlu0 %712
      %718 = vst.msk [vmem:[#allocation3 + $0x5] sm:$0x1] %vm597, %v707
      %719 = vst.msk [vmem:[#allocation3 + $0xd] sm:$0x1] %vm597, %v709
      %720 = vst.msk [vmem:[#allocation3 + $0x15] sm:$0x1] %vm597, %v711
      %721 = vst.msk [vmem:[#allocation3 + $0x1d] sm:$0x1] %vm597, %v713
      %v722 = vld [vmem:[#allocation2 + $0x6] sm:$0x1]
      %v723 = vld [vmem:[#allocation2 + $0xe] sm:$0x1]
      %v724 = vld [vmem:[#allocation2 + $0x16] sm:$0x1]
      %v725 = vld [vmem:[#allocation2 + $0x1e] sm:$0x1]
      %730 = vrot.lane.b32.xlu0 %v722, 127
      %v731 = vpop.permute.xlu0 %730
      %732 = vrot.lane.b32.xlu0 %v723, 127
      %v733 = vpop.permute.xlu0 %732
      %734 = vrot.lane.b32.xlu0 %v724, 127
      %v735 = vpop.permute.xlu0 %734
      %736 = vrot.lane.b32.xlu0 %v725, 127
      %v737 = vpop.permute.xlu0 %736
      %742 = vst.msk [vmem:[#allocation3 + $0x6] sm:$0x1] %vm597, %v731
      %743 = vst.msk [vmem:[#allocation3 + $0xe] sm:$0x1] %vm597, %v733
      %744 = vst.msk [vmem:[#allocation3 + $0x16] sm:$0x1] %vm597, %v735
      %745 = vst.msk [vmem:[#allocation3 + $0x1e] sm:$0x1] %vm597, %v737
      %v746 = vld [vmem:[#allocation2 + $0x7] sm:$0x1]
      %v747 = vld [vmem:[#allocation2 + $0xf] sm:$0x1]
      %v748 = vld [vmem:[#allocation2 + $0x17] sm:$0x1]
      %v749 = vld [vmem:[#allocation2 + $0x1f] sm:$0x1]
      %750 = vst.msk [vmem:[#allocation3 + $0x7] sm:$0x1] %vm597, %v746
      %751 = vst.msk [vmem:[#allocation3 + $0xf] sm:$0x1] %vm597, %v747
      %752 = vst.msk [vmem:[#allocation3 + $0x17] sm:$0x1] %vm597, %v748
      %753 = vst.msk [vmem:[#allocation3 + $0x1f] sm:$0x1] %vm597, %v749
      %v754 = vld [vmem:[%s373] sm:$0xff]
      %v755 = vld [vmem:[%s404] sm:$0x1]
      %v756 = vperm.slane %v755, 0
      %v757 = vadd.f32 %v754, %v756
      %v758 = vmul.f32 %v757, 0.35355338
      %v759 = vpack.c.bf16 %v758, %v758
      %v760 = vld [vmem:[%s383] sm:$0xff]
      %v761 = vpack.c.bf16 %v760, %v760
      %v762 = vld [vmem:[#allocation3] sm:$0xff]
      %v764 = vsel %vm428, %v759, 0
      %v767 = vsel %vm428, %v761, 0
      %769 = vmatpush.bf16.xpose.msra.mxu0 0
      %770 = vmatpush.bf16.xpose.msra.mxu0 0
      %771 = vmatpush.bf16.xpose.msra.mxu0 0
      %772 = vmatpush.bf16.xpose.msra.mxu0 0
      %773 = vmatpush.bf16.xpose.msra.mxu0 0
      %774 = vmatpush.bf16.xpose.msra.mxu0 0
      %775 = vmatpush.bf16.xpose.msra.mxu0 0
      %776 = vmatpush.bf16.xpose.msra.mxu0 %v767
      %777 = vmatmul.bf16.gmra.mxu0 %v764
      %v778 = vpop.f32.mrf.mxu0
      %v779 = vadd.f32 %v762, %v778
      %v780 = vpop.f32.mrf.mxu0
      %781 = vdwg.mxu0
      %v782 = vsel %vm428, %v779, -inf
      %783 = vmax.xlane.f32.xlu0 %v782
      %v784 = vpop.xlane.xlu0 %783
      %v785 = vsub.f32 %v779, %v784
      %v786 = vmul.f32 %v785, 1.442695
      %v787 = vpow.pop %v786
      %v788 = vsel %vm428, %v787, 0.0
      %789 = vadd.xlane.f32.xlu0 %v788
      %v790 = vpop.xlane.xlu0 %789
      %v791 = vrcp.pop %v790
      %v792 = vmul.f32 %v787, %v791
      %v793 = vpack.c.bf16 %v792, %v792
      %v794 = vld [vmem:[%s393] sm:$0xff]
      %v795 = vpack.c.bf16 %v794, %v794
      %v797 = vsel %vm428, %v793, 0
      %vm799 = vcmask 1043456
      %v801 = vsel %vm799, %v795, 0
      %803 = vmatpush.bf16.msra.mxu0 0
      %804 = vmatpush.bf16.msra.mxu0 0
      %805 = vmatpush.bf16.msra.mxu0 0
      %806 = vmatpush.bf16.msra.mxu0 0
      %807 = vmatpush.bf16.msra.mxu0 0
      %808 = vmatpush.bf16.msra.mxu0 0
      %809 = vmatpush.bf16.msra.mxu0 0
      %810 = vmatpush.bf16.msra.mxu0 %v801
      %811 = vmatmul.bf16.gmra.mxu0 %v797
      %v812 = vpop.f32.mrf.mxu0
      %v813 = vadd.f32 0.0, %v812
      %v814 = vpop.f32.mrf.mxu0
      %815 = vdwg.mxu0
      %816 = vst.msk [vmem:[%s417] sm:$0xff] %vm428, %v813
      %v817 = vld [vmem:[%s449] sm:$0xff]
      %v818 = vld [vmem:[%s404 + $0x1] sm:$0x1]
      %v819 = vperm.slane %v818, 0
      %v820 = vadd.f32 %v817, %v819
      %v821 = vmul.f32 %v820, 0.35355338
      %v822 = vpack.c.bf16 %v821, %v821
      %s823 = scalar_lea.vmem %s383, 8
      %v824 = vld [vmem:[%s823] sm:$0xff]
      %v825 = vpack.c.bf16 %v824, %v824
      %s826 = scalar_lea.vmem [#allocation3], 8
      %v827 = vld [vmem:[%s826] sm:$0xff]
      %v829 = vsel %vm428, %v822, 0
      %v832 = vsel %vm428, %v825, 0
      %834 = vmatpush.bf16.xpose.msra.mxu0 0
      %835 = vmatpush.bf16.xpose.msra.mxu0 0
      %836 = vmatpush.bf16.xpose.msra.mxu0 0
      %837 = vmatpush.bf16.xpose.msra.mxu0 0
      %838 = vmatpush.bf16.xpose.msra.mxu0 0
      %839 = vmatpush.bf16.xpose.msra.mxu0 0
      %840 = vmatpush.bf16.xpose.msra.mxu0 0
      %841 = vmatpush.bf16.xpose.msra.mxu0 %v832
      %842 = vmatmul.bf16.gmra.mxu0 %v829
      %v843 = vpop.f32.mrf.mxu0
      %v844 = vadd.f32 %v827, %v843
      %v845 = vpop.f32.mrf.mxu0
      %846 = vdwg.mxu0
      %v847 = vsel %vm428, %v844, -inf
      %848 = vmax.xlane.f32.xlu0 %v847
      %v849 = vpop.xlane.xlu0 %848
      %v850 = vsub.f32 %v844, %v849
      %v851 = vmul.f32 %v850, 1.442695
      %v852 = vpow.pop %v851
      %v853 = vsel %vm428, %v852, 0.0
      %854 = vadd.xlane.f32.xlu0 %v853
      %v855 = vpop.xlane.xlu0 %854
      %v856 = vrcp.pop %v855
      %v857 = vmul.f32 %v852, %v856
      %v858 = vpack.c.bf16 %v857, %v857
      %s859 = scalar_lea.vmem %s393, 8
      %v860 = vld [vmem:[%s859] sm:$0xff]
      %v861 = vpack.c.bf16 %v860, %v860
      %v863 = vsel %vm428, %v858, 0
      %v866 = vsel %vm799, %v861, 0
      %868 = vmatpush.bf16.msra.mxu0 0
      %869 = vmatpush.bf16.msra.mxu0 0
      %870 = vmatpush.bf16.msra.mxu0 0
      %871 = vmatpush.bf16.msra.mxu0 0
      %872 = vmatpush.bf16.msra.mxu0 0
      %873 = vmatpush.bf16.msra.mxu0 0
      %874 = vmatpush.bf16.msra.mxu0 0
      %875 = vmatpush.bf16.msra.mxu0 %v866
      %876 = vmatmul.bf16.gmra.mxu0 %v863
      %v877 = vpop.f32.mrf.mxu0
      %v878 = vadd.f32 0.0, %v877
      %v879 = vpop.f32.mrf.mxu0
      %880 = vdwg.mxu0
      %s881 = scalar_lea.vmem %s417, 8
      %882 = vst.msk [vmem:[%s881] sm:$0xff] %vm428, %v878
      %v883 = vld [vmem:[%s480] sm:$0xff]
      %v884 = vld [vmem:[%s404 + $0x2] sm:$0x1]
      %v885 = vperm.slane %v884, 0
      %v886 = vadd.f32 %v883, %v885
      %v887 = vmul.f32 %v886, 0.35355338
      %v888 = vpack.c.bf16 %v887, %v887
      %s889 = scalar_lea.vmem %s383, 16
      %v890 = vld [vmem:[%s889] sm:$0xff]
      %v891 = vpack.c.bf16 %v890, %v890
      %s892 = scalar_lea.vmem [#allocation3], 16
      %v893 = vld [vmem:[%s892] sm:$0xff]
      %v895 = vsel %vm428, %v888, 0
      %v898 = vsel %vm428, %v891, 0
      %900 = vmatpush.bf16.xpose.msra.mxu0 0
      %901 = vmatpush.bf16.xpose.msra.mxu0 0
      %902 = vmatpush.bf16.xpose.msra.mxu0 0
      %903 = vmatpush.bf16.xpose.msra.mxu0 0
      %904 = vmatpush.bf16.xpose.msra.mxu0 0
      %905 = vmatpush.bf16.xpose.msra.mxu0 0
      %906 = vmatpush.bf16.xpose.msra.mxu0 0
      %907 = vmatpush.bf16.xpose.msra.mxu0 %v898
      %908 = vmatmul.bf16.gmra.mxu0 %v895
      %v909 = vpop.f32.mrf.mxu0
      %v910 = vadd.f32 %v893, %v909
      %v911 = vpop.f32.mrf.mxu0
      %912 = vdwg.mxu0
      %v913 = vsel %vm428, %v910, -inf
      %914 = vmax.xlane.f32.xlu0 %v913
      %v915 = vpop.xlane.xlu0 %914
      %v916 = vsub.f32 %v910, %v915
      %v917 = vmul.f32 %v916, 1.442695
      %v918 = vpow.pop %v917
      %v919 = vsel %vm428, %v918, 0.0
      %920 = vadd.xlane.f32.xlu0 %v919
      %v921 = vpop.xlane.xlu0 %920
      %v922 = vrcp.pop %v921
      %v923 = vmul.f32 %v918, %v922
      %v924 = vpack.c.bf16 %v923, %v923
      %s925 = scalar_lea.vmem %s393, 16
      %v926 = vld [vmem:[%s925] sm:$0xff]
      %v927 = vpack.c.bf16 %v926, %v926
      %v929 = vsel %vm428, %v924, 0
      %v932 = vsel %vm799, %v927, 0
      %934 = vmatpush.bf16.msra.mxu0 0
      %935 = vmatpush.bf16.msra.mxu0 0
      %936 = vmatpush.bf16.msra.mxu0 0
      %937 = vmatpush.bf16.msra.mxu0 0
      %938 = vmatpush.bf16.msra.mxu0 0
      %939 = vmatpush.bf16.msra.mxu0 0
      %940 = vmatpush.bf16.msra.mxu0 0
      %941 = vmatpush.bf16.msra.mxu0 %v932
      %942 = vmatmul.bf16.gmra.mxu0 %v929
      %v943 = vpop.f32.mrf.mxu0
      %v944 = vadd.f32 0.0, %v943
      %v945 = vpop.f32.mrf.mxu0
      %946 = vdwg.mxu0
      %s947 = scalar_lea.vmem %s417, 16
      %948 = vst.msk [vmem:[%s947] sm:$0xff] %vm428, %v944
      %v949 = vld [vmem:[%s511] sm:$0xff]
      %v950 = vld [vmem:[%s404 + $0x3] sm:$0x1]
      %v951 = vperm.slane %v950, 0
      %v952 = vadd.f32 %v949, %v951
      %v953 = vmul.f32 %v952, 0.35355338
      %v954 = vpack.c.bf16 %v953, %v953
      %s955 = scalar_lea.vmem %s383, 24
      %v956 = vld [vmem:[%s955] sm:$0xff]
      %v957 = vpack.c.bf16 %v956, %v956
      %s958 = scalar_lea.vmem [#allocation3], 24
      %v959 = vld [vmem:[%s958] sm:$0xff]
      %v961 = vsel %vm428, %v954, 0
      %v964 = vsel %vm428, %v957, 0
      %966 = vmatpush.bf16.xpose.msra.mxu0 0
      %967 = vmatpush.bf16.xpose.msra.mxu0 0
      %968 = vmatpush.bf16.xpose.msra.mxu0 0
      %969 = vmatpush.bf16.xpose.msra.mxu0 0
      %970 = vmatpush.bf16.xpose.msra.mxu0 0
      %971 = vmatpush.bf16.xpose.msra.mxu0 0
      %972 = vmatpush.bf16.xpose.msra.mxu0 0
      %973 = vmatpush.bf16.xpose.msra.mxu0 %v964
      %974 = vmatmul.bf16.gmra.mxu0 %v961
      %v975 = vpop.f32.mrf.mxu0
      %v976 = vadd.f32 %v959, %v975
      %v977 = vpop.f32.mrf.mxu0
      %978 = vdwg.mxu0
      %v979 = vsel %vm428, %v976, -inf
      %980 = vmax.xlane.f32.xlu0 %v979
      %v981 = vpop.xlane.xlu0 %980
      %v982 = vsub.f32 %v976, %v981
      %v983 = vmul.f32 %v982, 1.442695
      %v984 = vpow.pop %v983
      %v985 = vsel %vm428, %v984, 0.0
      %986 = vadd.xlane.f32.xlu0 %v985
      %v987 = vpop.xlane.xlu0 %986
      %v988 = vrcp.pop %v987
      %v989 = vmul.f32 %v984, %v988
      %v990 = vpack.c.bf16 %v989, %v989
      %s991 = scalar_lea.vmem %s393, 24
      %v992 = vld [vmem:[%s991] sm:$0xff]
      %v993 = vpack.c.bf16 %v992, %v992
      %v995 = vsel %vm428, %v990, 0
      %v998 = vsel %vm799, %v993, 0
      %1000 = vmatpush.bf16.msra.mxu0 0
      %1001 = vmatpush.bf16.msra.mxu0 0
      %1002 = vmatpush.bf16.msra.mxu0 0
      %1003 = vmatpush.bf16.msra.mxu0 0
      %1004 = vmatpush.bf16.msra.mxu0 0
      %1005 = vmatpush.bf16.msra.mxu0 0
      %1006 = vmatpush.bf16.msra.mxu0 0
      %1007 = vmatpush.bf16.msra.mxu0 %v998
      %1008 = vmatmul.bf16.gmra.mxu0 %v995
      %v1009 = vpop.f32.mrf.mxu0
      %v1010 = vadd.f32 0.0, %v1009
      %v1011 = vpop.f32.mrf.mxu0
      %1012 = vdwg.mxu0
      %s1013 = scalar_lea.vmem %s417, 24
      %1014 = vst.msk [vmem:[%s1013] sm:$0xff] %vm428, %v1010
      %s1015 = smul.u32 4, %s21
      %p1016 = scmp.lt.s32.totalorder %s22, 1
      %s1017 = scalar_select %p1016, %s22, 1
      %p1018 = scmp.lt.s32.totalorder %s1015, 3
      %s1019 = scalar_select %p1018, %s1015, 3
      %s1020 = smul.addr %s1017, 4
      %s1021 = sadd.s32 %s1019, %s1020
      %s1022 = smul.addr %s1021, 8
      %s1023 = scalar_lea.vmem %s6, %s1022
      // Predicated region
      $region45: #{rel_attn_forward.6} parent=43 // pred_check
        %p1024 = pneg %p211
      $region46: #{rel_attn_forward.6} parent=43 // pred_check_branch
        %1026 = sbr.rel (%p1024) target = $region48
      $region47: #{rel_attn_forward.6} parent=43 // pred_region
        %s1027 = smul.u32 4, %s21
      $region48: #{rel_attn_forward.6} parent=43 // pred_fallthru
        _
    $region44: #{rel_attn_forward.6} parent=5 // pred_fallthru
      _
    %p1028 = scmp.le.s32.totalorder 2, %s12
    // Predicated region
    $region49: #{rel_attn_forward.6} parent=5 // pred_check
      %p1029 = pneg %p1028
    $region50: #{rel_attn_forward.6} parent=5 // pred_check_branch
      %1031 = sbr.rel (%p1029) target = $region52
    $region51: #{rel_attn_forward.6} parent=5 // pred_region
      %s1032 = ssub.s32 %s12, 2
      // Predicated region
      $region53: #{rel_attn_forward.6} parent=51 // pred_check
        %p1033 = pneg %p217
      $region54: #{rel_attn_forward.6} parent=51 // pred_check_branch
        %1035 = sbr.rel (%p1033) target = $region56
      $region55: #{rel_attn_forward.6} parent=51 // pred_region
        %s1036 = smul.u32 4, %s23
        %p1037 = scmp.lt.s32.totalorder %s24, 1
        %s1038 = scalar_select %p1037, %s24, 1
        %p1039 = scmp.lt.s32.totalorder %s1036, 3
        %s1040 = scalar_select %p1039, %s1036, 3
        %s1041 = smul.addr %s1038, 4
        %s1042 = sadd.s32 %s1040, %s1041
        %s1043 = smul.addr %s1042, 8
        %s1044 = scalar_lea.vmem %s6, %s1043
      $region56: #{rel_attn_forward.6} parent=51 // pred_fallthru
        _
    $region52: #{rel_attn_forward.6} parent=5 // pred_fallthru
      _
  $region6: #{rel_attn_forward.6} parent=0 // loop_footer
    %s16 = sadd.s32 1, %s12
  $region7: #{rel_attn_forward.6} parent=0 // loop_footer_branch
    %11 = sbr.rel target = $region3
  $region8: #{rel_attn_forward.6} parent=0 // loop_exit
    _

</llo_original>
